<compile_context>
chip_gen: v5e
topology: v5e:2x2
jax: 0.10.0
libtpu: 0.0.40
codegen_flags: <defaults>
</compile_context>

<pallas_src>
import functools

import jax
import jax.numpy as jnp
from jax.experimental import pallas as pl
from jax.experimental.pallas import tpu as pltpu


def _ln_linear_kernel(x_ref, g_ref, b_ref, w_ref, o_ref, *, eps, inv_k):
    """One M-tile of: out = LayerNorm(x) @ W   (f32 stats + f32 MXU accumulation)."""
    x = x_ref[...].astype(jnp.float32)                            # (tm, K)
    mean = jnp.sum(x, axis=-1, keepdims=True) * inv_k
    xc = x - mean
    var = jnp.sum(xc * xc, axis=-1, keepdims=True) * inv_k
    inv = jax.lax.rsqrt(var + eps)                                # EUP slot (free-ish)
    xn = (xc * inv) * g_ref[...].astype(jnp.float32) + b_ref[...].astype(jnp.float32)
    acc = jnp.dot(xn.astype(w_ref.dtype), w_ref[...],
                  preferred_element_type=jnp.float32)             # MXU
    o_ref[...] = acc.astype(o_ref.dtype)


def layernorm_linear(merged, gamma, beta, w_mat, *, eps, out_dtype, tm=1024):
    """merged: (M, K); gamma/beta: (K,) f32; w_mat: (K, N). Returns (M, N) out_dtype."""
    M, K = merged.shape
    K2, N = w_mat.shape
    assert K == K2

    tm = min(tm, M)
    if tm != M:
        tm = max(8, (tm // 8) * 8)          # (8,128) rule for the second-minor block dim
    grid = (pl.cdiv(M, tm),)                # ragged last block handled by Pallas (no pad/slice)

    gamma2 = gamma.reshape(1, K)
    beta2 = beta.reshape(1, K)

    flops = 2 * M * K * N + 8 * M * K
    bytes_accessed = (M * K * merged.dtype.itemsize
                      + K * N * w_mat.dtype.itemsize
                      + 2 * K * 4
                      + M * N * jnp.dtype(out_dtype).itemsize)

    kernel = functools.partial(_ln_linear_kernel, eps=eps, inv_k=1.0 / K)
    return pl.pallas_call(
        kernel,
        out_shape=jax.ShapeDtypeStruct((M, N), out_dtype),
        grid_spec=pltpu.PrefetchScalarGridSpec(
            num_scalar_prefetch=0,
            grid=grid,
            in_specs=[
                pl.BlockSpec((tm, K), lambda i: (i, 0)),   # activation row tile
                pl.BlockSpec((1, K), lambda i: (0, 0)),    # LN gamma (resident)
                pl.BlockSpec((1, K), lambda i: (0, 0)),    # LN beta  (resident)
                pl.BlockSpec((K, N), lambda i: (0, 0)),    # linear weight (resident)
            ],
            out_specs=pl.BlockSpec((tm, N), lambda i: (i, 0)),
        ),
        compiler_params=pltpu.CompilerParams(
            dimension_semantics=("parallel",)),            # megacore split of M on v7x
        cost_estimate=pl.CostEstimate(
            flops=flops, transcendentals=M, bytes_accessed=bytes_accessed),
    )(merged, gamma2, beta2, w_mat)


def downsample_forward(x, gamma, beta, w_linear, *, inp_shape, eps=1e-5,
                       compute_dtype=jnp.bfloat16, tm=1024):
    """x: (B, Z*H*W, C) -> (B, Z*ceil(H/2)*ceil(W/2), 2*C). Matches DownSample.forward."""
    B, S, C = x.shape
    Z, H, W = inp_shape
    assert S == Z * H * W

    xg = x.reshape(B, Z, H, W, C)
    # pad_2d: make H, W divisible by 2.
    # TODO(synk): assumes right/bottom zero padding; exact pad_2d convention not shown in the spec.
    pad_h = (-H) % 2
    pad_w = (-W) % 2
    if pad_h or pad_w:
        xg = jnp.pad(xg, ((0, 0), (0, 0), (0, pad_h), (0, pad_w), (0, 0)))
    Hh, Ww = (H + pad_h) // 2, (W + pad_w) // 2

    # 2x2 merge with feature order (n1, n2, c): channel stays the minor (lane) dim,
    # only the tiny n1 axis moves. XLA fuses the bf16 cast into this single copy.
    merged = (
        xg.reshape(B, Z, Hh, 2, Ww, 2, C)
          .transpose(0, 1, 2, 4, 3, 5, 6)                   # (B, Z, Hh, Ww, n1, n2, C)
          .reshape(B * Z * Hh * Ww, 4 * C)
          .astype(compute_dtype)
    )

    # nn.Linear(4C -> 2C, bias=False): GEMM matrix is weight^T (4C, 2C). Tiny -> permute it,
    # not the activations.
    w_mat = w_linear.T.astype(compute_dtype)

    out = layernorm_linear(merged,
                           gamma.astype(jnp.float32),
                           beta.astype(jnp.float32),
                           w_mat, eps=eps, out_dtype=x.dtype, tm=tm)
    # Final 'b (z hh ww) (2c)' layout is already what we have: free reshape, no concat/copy.
    return out.reshape(B, Z * Hh * Ww, 2 * C)


if __name__ == "__main__":
    # Small config consistent with the module.
    B = 2
    inp_shape = (4, 16, 16)        # (Z, H, W)
    dim = 32
    Z, H, W = inp_shape
    eps = 1e-5

    key = jax.random.PRNGKey(0)
    kx, kg, kb, kw = jax.random.split(key, 4)
    x = jax.random.normal(kx, (B, Z * H * W, dim), jnp.float32)
    gamma = 1.0 + 0.1 * jax.random.normal(kg, (4 * dim,), jnp.float32)   # LayerNorm weight
    beta = 0.1 * jax.random.normal(kb, (4 * dim,), jnp.float32)          # LayerNorm bias
    w_linear = 0.05 * jax.random.normal(kw, (2 * dim, 4 * dim), jnp.float32)  # (out, in)

    fwd_bf16 = jax.jit(functools.partial(downsample_forward, inp_shape=inp_shape,
                                         compute_dtype=jnp.bfloat16))
    fwd_f32 = jax.jit(functools.partial(downsample_forward, inp_shape=inp_shape,
                                        compute_dtype=jnp.float32))
    out_bf16 = jax.block_until_ready(fwd_bf16(x, gamma, beta, w_linear))
    out_f32 = jax.block_until_ready(fwd_f32(x, gamma, beta, w_linear))

    # Pure-JAX f32 reference of the PyTorch forward.
    Hh, Ww = H // 2, W // 2
    xr = (x.reshape(B, Z, Hh, 2, Ww, 2, dim)
            .transpose(0, 1, 2, 4, 3, 5, 6)
            .reshape(B, Z * Hh * Ww, 4 * dim))
    mu = xr.mean(-1, keepdims=True)
    var = ((xr - mu) ** 2).mean(-1, keepdims=True)
    xn = (xr - mu) / jnp.sqrt(var + eps) * gamma + beta
    ref = xn @ w_linear.T

    assert out_bf16.shape == (B, Z * Hh * Ww, 2 * dim)
    assert out_f32.shape == (B, Z * Hh * Ww, 2 * dim)
    # bf16 activations/weight (f32 stats + accumulation) -> relaxed tolerance.
    assert jnp.allclose(out_f32, ref, atol=3e-2, rtol=3e-2)
    assert jnp.allclose(out_bf16, ref, atol=3e-2, rtol=3e-2)
    print("KERNEL_OK")
</pallas_src>

<mosaic_0001>
module attributes {stable_mosaic.version = 11 : i64} {
  func.func @_ln_linear_kernel(%arg0: i32, %arg1: memref<512x128xbf16, #tpu.memory_space<vmem>>, %arg2: memref<1x128xf32, #tpu.memory_space<vmem>>, %arg3: memref<1x128xf32, #tpu.memory_space<vmem>>, %arg4: memref<128x64xbf16, #tpu.memory_space<vmem>>, %arg5: memref<512x64xf32, #tpu.memory_space<vmem>>) attributes {dimension_semantics = [#tpu.dimension_semantics<parallel>], iteration_bounds = array<i64: 1>, scalar_prefetch = 0 : i64, scratch_operands = 0 : i64, tpu.core_type = #tpu.core_type<tc>, window_params = [{transform_indices = @transform_0, window_bounds = array<i64: 512, 128>}, {pipeline_mode = #tpu.pipeline_mode<synchronous>, transform_indices = @transform_1, window_bounds = array<i64: 1, 128>}, {pipeline_mode = #tpu.pipeline_mode<synchronous>, transform_indices = @transform_2, window_bounds = array<i64: 1, 128>}, {pipeline_mode = #tpu.pipeline_mode<synchronous>, transform_indices = @transform_3, window_bounds = array<i64: 128, 64>}, {transform_indices = @transform_4, window_bounds = array<i64: 512, 64>}]} {
    %c0 = arith.constant 0 : index
    %c0_0 = arith.constant 0 : index
    %0 = vector.load %arg1[%c0, %c0_0] : memref<512x128xbf16, #tpu.memory_space<vmem>>, vector<512x128xbf16>
    %1 = arith.extf %0 : vector<512x128xbf16> to vector<512x128xf32>
    %cst = arith.constant dense<0.000000e+00> : vector<512xf32>
    %2 = vector.multi_reduction <add>, %1, %cst [1] : vector<512x128xf32> to vector<512xf32>
    %3 = vector.shape_cast %2 : vector<512xf32> to vector<512x1xf32>
    %cst_1 = arith.constant 7.812500e-03 : f32
    %4 = vector.broadcast %cst_1 : f32 to vector<512x1xf32>
    %5 = arith.mulf %3, %4 : vector<512x1xf32>
    %6 = vector.broadcast %5 : vector<512x1xf32> to vector<512x128xf32>
    %7 = arith.subf %1, %6 : vector<512x128xf32>
    %8 = arith.mulf %7, %7 : vector<512x128xf32>
    %cst_2 = arith.constant dense<0.000000e+00> : vector<512xf32>
    %9 = vector.multi_reduction <add>, %8, %cst_2 [1] : vector<512x128xf32> to vector<512xf32>
    %10 = vector.shape_cast %9 : vector<512xf32> to vector<512x1xf32>
    %cst_3 = arith.constant 7.812500e-03 : f32
    %11 = vector.broadcast %cst_3 : f32 to vector<512x1xf32>
    %12 = arith.mulf %10, %11 : vector<512x1xf32>
    %cst_4 = arith.constant 9.99999974E-6 : f32
    %13 = vector.broadcast %cst_4 : f32 to vector<512x1xf32>
    %14 = arith.addf %12, %13 : vector<512x1xf32>
    %15 = math.rsqrt %14 : vector<512x1xf32>
    %16 = vector.broadcast %15 : vector<512x1xf32> to vector<512x128xf32>
    %17 = arith.mulf %7, %16 : vector<512x128xf32>
    %c0_5 = arith.constant 0 : index
    %c0_6 = arith.constant 0 : index
    %18 = vector.load %arg2[%c0_5, %c0_6] : memref<1x128xf32, #tpu.memory_space<vmem>>, vector<1x128xf32>
    %19 = vector.broadcast %18 : vector<1x128xf32> to vector<512x128xf32>
    %20 = arith.mulf %17, %19 : vector<512x128xf32>
    %c0_7 = arith.constant 0 : index
    %c0_8 = arith.constant 0 : index
    %21 = vector.load %arg3[%c0_7, %c0_8] : memref<1x128xf32, #tpu.memory_space<vmem>>, vector<1x128xf32>
    %22 = vector.broadcast %21 : vector<1x128xf32> to vector<512x128xf32>
    %23 = arith.addf %20, %22 : vector<512x128xf32>
    %24 = arith.truncf %23 : vector<512x128xf32> to vector<512x128xbf16>
    %c0_9 = arith.constant 0 : index
    %c0_10 = arith.constant 0 : index
    %25 = vector.load %arg4[%c0_9, %c0_10] : memref<128x64xbf16, #tpu.memory_space<vmem>>, vector<128x64xbf16>
    %cst_11 = arith.constant dense<0.000000e+00> : vector<512x64xf32>
    %26 = tpu.matmul %24, %25, %cst_11 {dimension_numbers = #tpu.dot_dimension_numbers<[1], [0], [0], [1], [0, 0, 1, 1], [], []>} : vector<512x128xbf16>, vector<128x64xbf16>, vector<512x64xf32> -> vector<512x64xf32>
    %c0_12 = arith.constant 0 : index
    %c0_13 = arith.constant 0 : index
    %27 = vector.load %arg5[%c0_12, %c0_13] : memref<512x64xf32, #tpu.memory_space<vmem>>, vector<512x64xf32>
    tpu.vector_store %arg5[%c0_12, %c0_13], %26 {strides = array<i32>} : memref<512x64xf32, #tpu.memory_space<vmem>>, vector<512x64xf32>,
    return
  }
  func.func @transform_0(%arg0: i32) -> (i32, i32) {
    %c0_i32 = arith.constant 0 : i32
    %c0_i32_0 = arith.constant 0 : i32
    return %arg0, %c0_i32 : i32, i32
  }
  func.func @transform_1(%arg0: i32) -> (i32, i32) {
    %c0_i32 = arith.constant 0 : i32
    %c0_i32_0 = arith.constant 0 : i32
    %c0_i32_1 = arith.constant 0 : i32
    return %c0_i32, %c0_i32_0 : i32, i32
  }
  func.func @transform_2(%arg0: i32) -> (i32, i32) {
    %c0_i32 = arith.constant 0 : i32
    %c0_i32_0 = arith.constant 0 : i32
    %c0_i32_1 = arith.constant 0 : i32
    return %c0_i32, %c0_i32_0 : i32, i32
  }
  func.func @transform_3(%arg0: i32) -> (i32, i32) {
    %c0_i32 = arith.constant 0 : i32
    %c0_i32_0 = arith.constant 0 : i32
    %c0_i32_1 = arith.constant 0 : i32
    return %c0_i32, %c0_i32_0 : i32, i32
  }
  func.func @transform_4(%arg0: i32) -> (i32, i32) {
    %c0_i32 = arith.constant 0 : i32
    %c0_i32_0 = arith.constant 0 : i32
    return %arg0, %c0_i32 : i32, i32
  }
}

</mosaic_0001>

<llo_original>
// kernel: downsample_forward.1
$region0: #{downsample_forward.1}
  #allocation0 [shape = 'u32[]', space=smem, size = 0x4, offset = 0x4, fixed_abs, tag = 'smem constant byte address 0x4 - core index']
  #allocation1 [shape = 'u32[72,128]{1,0:T(1,128)}', space=vmem, size = 0x9000, scoped, tag = 'internal scratch']
  %s0 = inlined_call_operand.vmem [shape: bf16[512,128], index: 0, kind: input, shape index: {}]
  %s1 = inlined_call_operand.vmem [shape: f32[1,128], index: 1, kind: input, shape index: {}]
  %s2 = inlined_call_operand.vmem [shape: f32[1,128], index: 2, kind: input, shape index: {}]
  %s3 = inlined_call_operand.vmem [shape: bf16[128,64], index: 3, kind: input, shape index: {}]
  %s4 = inlined_call_operand.vmem [shape: f32[512,64], index: 4, kind: output, shape index: {}]
  %s5 = sld [smem:[#allocation0]]
  $region26: #{downsample_forward.1} parent=0
    _
  %s7 = ssub.s32 1, %s5
  %s8 = scalar_select 0, %s7, %s5
  // Predicated region
  $region2: #{downsample_forward.1} parent=0 // pred_check
    _
  $region3: #{downsample_forward.1} parent=0 // pred_check_branch
    %10 = sbr.rel (0) target = $region5
  $region4: #{downsample_forward.1} parent=0 // pred_region
    _
  $region5: #{downsample_forward.1} parent=0 // pred_fallthru
    _
  // Predicated region
  $region6: #{downsample_forward.1} parent=0 // pred_check
    _
  $region7: #{downsample_forward.1} parent=0 // pred_check_branch
    %12 = sbr.rel (0) target = $region9
  $region8: #{downsample_forward.1} parent=0 // pred_region
    _
  $region9: #{downsample_forward.1} parent=0 // pred_fallthru
    _
  // Predicated region
  $region10: #{downsample_forward.1} parent=0 // pred_check
    _
  $region11: #{downsample_forward.1} parent=0 // pred_check_branch
    %14 = sbr.rel (0) target = $region13
  $region12: #{downsample_forward.1} parent=0 // pred_region
    _
  $region13: #{downsample_forward.1} parent=0 // pred_fallthru
    _
  // Predicated region
  $region14: #{downsample_forward.1} parent=0 // pred_check
    _
  $region15: #{downsample_forward.1} parent=0 // pred_check_branch
    %16 = sbr.rel (0) target = $region17
  $region16: #{downsample_forward.1} parent=0 // pred_region
    _
  $region17: #{downsample_forward.1} parent=0 // pred_fallthru
    _
  %v17 = vld [vmem:[%s0] sm:$0xf]
  %v18 = vld [vmem:[%s0 + $0x4] sm:$0xf]
  %v19 = vld [vmem:[%s0 + $0x8] sm:$0xf]
  %v20 = vld [vmem:[%s0 + $0xc] sm:$0xf]
  %v21 = vld [vmem:[%s0 + $0x10] sm:$0xf]
  %v22 = vld [vmem:[%s0 + $0x14] sm:$0xf]
  %v23 = vld [vmem:[%s0 + $0x18] sm:$0xf]
  %v24 = vld [vmem:[%s0 + $0x1c] sm:$0xf]
  %v25 = vld [vmem:[%s0 + $0x20] sm:$0xf]
  %v26 = vld [vmem:[%s0 + $0x24] sm:$0xf]
  %v27 = vld [vmem:[%s0 + $0x28] sm:$0xf]
  %v28 = vld [vmem:[%s0 + $0x2c] sm:$0xf]
  %v29 = vld [vmem:[%s0 + $0x30] sm:$0xf]
  %v30 = vld [vmem:[%s0 + $0x34] sm:$0xf]
  %v31 = vld [vmem:[%s0 + $0x38] sm:$0xf]
  %v32 = vld [vmem:[%s0 + $0x3c] sm:$0xf]
  %v33 = vld [vmem:[%s0 + $0x40] sm:$0xf]
  %v34 = vld [vmem:[%s0 + $0x44] sm:$0xf]
  %v35 = vld [vmem:[%s0 + $0x48] sm:$0xf]
  %v36 = vld [vmem:[%s0 + $0x4c] sm:$0xf]
  %v37 = vld [vmem:[%s0 + $0x50] sm:$0xf]
  %v38 = vld [vmem:[%s0 + $0x54] sm:$0xf]
  %v39 = vld [vmem:[%s0 + $0x58] sm:$0xf]
  %v40 = vld [vmem:[%s0 + $0x5c] sm:$0xf]
  %v41 = vld [vmem:[%s0 + $0x60] sm:$0xf]
  %v42 = vld [vmem:[%s0 + $0x64] sm:$0xf]
  %v43 = vld [vmem:[%s0 + $0x68] sm:$0xf]
  %v44 = vld [vmem:[%s0 + $0x6c] sm:$0xf]
  %v45 = vld [vmem:[%s0 + $0x70] sm:$0xf]
  %v46 = vld [vmem:[%s0 + $0x74] sm:$0xf]
  %v47 = vld [vmem:[%s0 + $0x78] sm:$0xf]
  %v48 = vld [vmem:[%s0 + $0x7c] sm:$0xf]
  %v49 = vld [vmem:[%s0 + $0x80] sm:$0xf]
  %v50 = vld [vmem:[%s0 + $0x84] sm:$0xf]
  %v51 = vld [vmem:[%s0 + $0x88] sm:$0xf]
  %v52 = vld [vmem:[%s0 + $0x8c] sm:$0xf]
  %v53 = vld [vmem:[%s0 + $0x90] sm:$0xf]
  %v54 = vld [vmem:[%s0 + $0x94] sm:$0xf]
  %v55 = vld [vmem:[%s0 + $0x98] sm:$0xf]
  %v56 = vld [vmem:[%s0 + $0x9c] sm:$0xf]
  %v57 = vld [vmem:[%s0 + $0xa0] sm:$0xf]
  %v58 = vld [vmem:[%s0 + $0xa4] sm:$0xf]
  %v59 = vld [vmem:[%s0 + $0xa8] sm:$0xf]
  %v60 = vld [vmem:[%s0 + $0xac] sm:$0xf]
  %v61 = vld [vmem:[%s0 + $0xb0] sm:$0xf]
  %v62 = vld [vmem:[%s0 + $0xb4] sm:$0xf]
  %v63 = vld [vmem:[%s0 + $0xb8] sm:$0xf]
  %v64 = vld [vmem:[%s0 + $0xbc] sm:$0xf]
  %v65 = vld [vmem:[%s0 + $0xc0] sm:$0xf]
  %v66 = vld [vmem:[%s0 + $0xc4] sm:$0xf]
  %v67 = vld [vmem:[%s0 + $0xc8] sm:$0xf]
  %v68 = vld [vmem:[%s0 + $0xcc] sm:$0xf]
  %v69 = vld [vmem:[%s0 + $0xd0] sm:$0xf]
  %v70 = vld [vmem:[%s0 + $0xd4] sm:$0xf]
  %v71 = vld [vmem:[%s0 + $0xd8] sm:$0xf]
  %v72 = vld [vmem:[%s0 + $0xdc] sm:$0xf]
  %v73 = vld [vmem:[%s0 + $0xe0] sm:$0xf]
  %v74 = vld [vmem:[%s0 + $0xe4] sm:$0xf]
  %v75 = vld [vmem:[%s0 + $0xe8] sm:$0xf]
  %v76 = vld [vmem:[%s0 + $0xec] sm:$0xf]
  %v77 = vld [vmem:[%s0 + $0xf0] sm:$0xf]
  %v78 = vld [vmem:[%s0 + $0xf4] sm:$0xf]
  %v79 = vld [vmem:[%s0 + $0xf8] sm:$0xf]
  %v80 = vld [vmem:[%s0 + $0xfc] sm:$0xf]
  %v81 = vunpack.c.l.bf16 %v17
  %v82 = vunpack.c.l.bf16 %v18
  %v83 = vunpack.c.l.bf16 %v19
  %v84 = vunpack.c.l.bf16 %v20
  %v85 = vunpack.c.l.bf16 %v21
  %v86 = vunpack.c.l.bf16 %v22
  %v87 = vunpack.c.l.bf16 %v23
  %v88 = vunpack.c.l.bf16 %v24
  %v89 = vunpack.c.l.bf16 %v25
  %v90 = vunpack.c.l.bf16 %v26
  %v91 = vunpack.c.l.bf16 %v27
  %v92 = vunpack.c.l.bf16 %v28
  %v93 = vunpack.c.l.bf16 %v29
  %v94 = vunpack.c.l.bf16 %v30
  %v95 = vunpack.c.l.bf16 %v31
  %v96 = vunpack.c.l.bf16 %v32
  %v97 = vunpack.c.l.bf16 %v33
  %v98 = vunpack.c.l.bf16 %v34
  %v99 = vunpack.c.l.bf16 %v35
  %v100 = vunpack.c.l.bf16 %v36
  %v101 = vunpack.c.l.bf16 %v37
  %v102 = vunpack.c.l.bf16 %v38
  %v103 = vunpack.c.l.bf16 %v39
  %v104 = vunpack.c.l.bf16 %v40
  %v105 = vunpack.c.l.bf16 %v41
  %v106 = vunpack.c.l.bf16 %v42
  %v107 = vunpack.c.l.bf16 %v43
  %v108 = vunpack.c.l.bf16 %v44
  %v109 = vunpack.c.l.bf16 %v45
  %v110 = vunpack.c.l.bf16 %v46
  %v111 = vunpack.c.l.bf16 %v47
  %v112 = vunpack.c.l.bf16 %v48
  %v113 = vunpack.c.l.bf16 %v49
  %v114 = vunpack.c.l.bf16 %v50
  %v115 = vunpack.c.l.bf16 %v51
  %v116 = vunpack.c.l.bf16 %v52
  %v117 = vunpack.c.l.bf16 %v53
  %v118 = vunpack.c.l.bf16 %v54
  %v119 = vunpack.c.l.bf16 %v55
  %v120 = vunpack.c.l.bf16 %v56
  %v121 = vunpack.c.l.bf16 %v57
  %v122 = vunpack.c.l.bf16 %v58
  %v123 = vunpack.c.l.bf16 %v59
  %v124 = vunpack.c.l.bf16 %v60
  %v125 = vunpack.c.l.bf16 %v61
  %v126 = vunpack.c.l.bf16 %v62
  %v127 = vunpack.c.l.bf16 %v63
  %v128 = vunpack.c.l.bf16 %v64
  %v129 = vunpack.c.l.bf16 %v65
  %v130 = vunpack.c.l.bf16 %v66
  %v131 = vunpack.c.l.bf16 %v67
  %v132 = vunpack.c.l.bf16 %v68
  %v133 = vunpack.c.l.bf16 %v69
  %v134 = vunpack.c.l.bf16 %v70
  %v135 = vunpack.c.l.bf16 %v71
  %v136 = vunpack.c.l.bf16 %v72
  %v137 = vunpack.c.l.bf16 %v73
  %v138 = vunpack.c.l.bf16 %v74
  %v139 = vunpack.c.l.bf16 %v75
  %v140 = vunpack.c.l.bf16 %v76
  %v141 = vunpack.c.l.bf16 %v77
  %v142 = vunpack.c.l.bf16 %v78
  %v143 = vunpack.c.l.bf16 %v79
  %v144 = vunpack.c.l.bf16 %v80
  %145 = vadd.xlane.f32.xlu0 %v81
  %v146 = vpop.xlane.xlu0 %145
  %147 = vadd.xlane.f32.xlu0 %v82
  %v148 = vpop.xlane.xlu0 %147
  %149 = vadd.xlane.f32.xlu0 %v83
  %v150 = vpop.xlane.xlu0 %149
  %151 = vadd.xlane.f32.xlu0 %v84
  %v152 = vpop.xlane.xlu0 %151
  %153 = vadd.xlane.f32.xlu0 %v85
  %v154 = vpop.xlane.xlu0 %153
  %155 = vadd.xlane.f32.xlu0 %v86
  %v156 = vpop.xlane.xlu0 %155
  %157 = vadd.xlane.f32.xlu0 %v87
  %v158 = vpop.xlane.xlu0 %157
  %159 = vadd.xlane.f32.xlu0 %v88
  %v160 = vpop.xlane.xlu0 %159
  %161 = vadd.xlane.f32.xlu0 %v89
  %v162 = vpop.xlane.xlu0 %161
  %163 = vadd.xlane.f32.xlu0 %v90
  %v164 = vpop.xlane.xlu0 %163
  %165 = vadd.xlane.f32.xlu0 %v91
  %v166 = vpop.xlane.xlu0 %165
  %167 = vadd.xlane.f32.xlu0 %v92
  %v168 = vpop.xlane.xlu0 %167
  %169 = vadd.xlane.f32.xlu0 %v93
  %v170 = vpop.xlane.xlu0 %169
  %171 = vadd.xlane.f32.xlu0 %v94
  %v172 = vpop.xlane.xlu0 %171
  %173 = vadd.xlane.f32.xlu0 %v95
  %v174 = vpop.xlane.xlu0 %173
  %175 = vadd.xlane.f32.xlu0 %v96
  %v176 = vpop.xlane.xlu0 %175
  %177 = vadd.xlane.f32.xlu0 %v97
  %v178 = vpop.xlane.xlu0 %177
  %179 = vadd.xlane.f32.xlu0 %v98
  %v180 = vpop.xlane.xlu0 %179
  %181 = vadd.xlane.f32.xlu0 %v99
  %v182 = vpop.xlane.xlu0 %181
  %183 = vadd.xlane.f32.xlu0 %v100
  %v184 = vpop.xlane.xlu0 %183
  %185 = vadd.xlane.f32.xlu0 %v101
  %v186 = vpop.xlane.xlu0 %185
  %187 = vadd.xlane.f32.xlu0 %v102
  %v188 = vpop.xlane.xlu0 %187
  %189 = vadd.xlane.f32.xlu0 %v103
  %v190 = vpop.xlane.xlu0 %189
  %191 = vadd.xlane.f32.xlu0 %v104
  %v192 = vpop.xlane.xlu0 %191
  %193 = vadd.xlane.f32.xlu0 %v105
  %v194 = vpop.xlane.xlu0 %193
  %195 = vadd.xlane.f32.xlu0 %v106
  %v196 = vpop.xlane.xlu0 %195
  %197 = vadd.xlane.f32.xlu0 %v107
  %v198 = vpop.xlane.xlu0 %197
  %199 = vadd.xlane.f32.xlu0 %v108
  %v200 = vpop.xlane.xlu0 %199
  %201 = vadd.xlane.f32.xlu0 %v109
  %v202 = vpop.xlane.xlu0 %201
  %203 = vadd.xlane.f32.xlu0 %v110
  %v204 = vpop.xlane.xlu0 %203
  %205 = vadd.xlane.f32.xlu0 %v111
  %v206 = vpop.xlane.xlu0 %205
  %207 = vadd.xlane.f32.xlu0 %v112
  %v208 = vpop.xlane.xlu0 %207
  %209 = vadd.xlane.f32.xlu0 %v113
  %v210 = vpop.xlane.xlu0 %209
  %211 = vadd.xlane.f32.xlu0 %v114
  %v212 = vpop.xlane.xlu0 %211
  %213 = vadd.xlane.f32.xlu0 %v115
  %v214 = vpop.xlane.xlu0 %213
  %215 = vadd.xlane.f32.xlu0 %v116
  %v216 = vpop.xlane.xlu0 %215
  %217 = vadd.xlane.f32.xlu0 %v117
  %v218 = vpop.xlane.xlu0 %217
  %219 = vadd.xlane.f32.xlu0 %v118
  %v220 = vpop.xlane.xlu0 %219
  %221 = vadd.xlane.f32.xlu0 %v119
  %v222 = vpop.xlane.xlu0 %221
  %223 = vadd.xlane.f32.xlu0 %v120
  %v224 = vpop.xlane.xlu0 %223
  %225 = vadd.xlane.f32.xlu0 %v121
  %v226 = vpop.xlane.xlu0 %225
  %227 = vadd.xlane.f32.xlu0 %v122
  %v228 = vpop.xlane.xlu0 %227
  %229 = vadd.xlane.f32.xlu0 %v123
  %v230 = vpop.xlane.xlu0 %229
  %231 = vadd.xlane.f32.xlu0 %v124
  %v232 = vpop.xlane.xlu0 %231
  %233 = vadd.xlane.f32.xlu0 %v125
  %v234 = vpop.xlane.xlu0 %233
  %235 = vadd.xlane.f32.xlu0 %v126
  %v236 = vpop.xlane.xlu0 %235
  %237 = vadd.xlane.f32.xlu0 %v127
  %v238 = vpop.xlane.xlu0 %237
  %239 = vadd.xlane.f32.xlu0 %v128
  %v240 = vpop.xlane.xlu0 %239
  %241 = vadd.xlane.f32.xlu0 %v129
  %v242 = vpop.xlane.xlu0 %241
  %243 = vadd.xlane.f32.xlu0 %v130
  %v244 = vpop.xlane.xlu0 %243
  %245 = vadd.xlane.f32.xlu0 %v131
  %v246 = vpop.xlane.xlu0 %245
  %247 = vadd.xlane.f32.xlu0 %v132
  %v248 = vpop.xlane.xlu0 %247
  %249 = vadd.xlane.f32.xlu0 %v133
  %v250 = vpop.xlane.xlu0 %249
  %251 = vadd.xlane.f32.xlu0 %v134
  %v252 = vpop.xlane.xlu0 %251
  %253 = vadd.xlane.f32.xlu0 %v135
  %v254 = vpop.xlane.xlu0 %253
  %255 = vadd.xlane.f32.xlu0 %v136
  %v256 = vpop.xlane.xlu0 %255
  %257 = vadd.xlane.f32.xlu0 %v137
  %v258 = vpop.xlane.xlu0 %257
  %259 = vadd.xlane.f32.xlu0 %v138
  %v260 = vpop.xlane.xlu0 %259
  %261 = vadd.xlane.f32.xlu0 %v139
  %v262 = vpop.xlane.xlu0 %261
  %263 = vadd.xlane.f32.xlu0 %v140
  %v264 = vpop.xlane.xlu0 %263
  %265 = vadd.xlane.f32.xlu0 %v141
  %v266 = vpop.xlane.xlu0 %265
  %267 = vadd.xlane.f32.xlu0 %v142
  %v268 = vpop.xlane.xlu0 %267
  %269 = vadd.xlane.f32.xlu0 %v143
  %v270 = vpop.xlane.xlu0 %269
  %271 = vadd.xlane.f32.xlu0 %v144
  %v272 = vpop.xlane.xlu0 %271
  %v273 = vmul.f32 %v146, 0.0078125
  %v274 = vmul.f32 %v148, 0.0078125
  %v275 = vmul.f32 %v150, 0.0078125
  %v276 = vmul.f32 %v152, 0.0078125
  %v277 = vmul.f32 %v154, 0.0078125
  %v278 = vmul.f32 %v156, 0.0078125
  %v279 = vmul.f32 %v158, 0.0078125
  %v280 = vmul.f32 %v160, 0.0078125
  %v281 = vmul.f32 %v162, 0.0078125
  %v282 = vmul.f32 %v164, 0.0078125
  %v283 = vmul.f32 %v166, 0.0078125
  %v284 = vmul.f32 %v168, 0.0078125
  %v285 = vmul.f32 %v170, 0.0078125
  %v286 = vmul.f32 %v172, 0.0078125
  %v287 = vmul.f32 %v174, 0.0078125
  %v288 = vmul.f32 %v176, 0.0078125
  %v289 = vmul.f32 %v178, 0.0078125
  %v290 = vmul.f32 %v180, 0.0078125
  %v291 = vmul.f32 %v182, 0.0078125
  %v292 = vmul.f32 %v184, 0.0078125
  %v293 = vmul.f32 %v186, 0.0078125
  %v294 = vmul.f32 %v188, 0.0078125
  %v295 = vmul.f32 %v190, 0.0078125
  %v296 = vmul.f32 %v192, 0.0078125
  %v297 = vmul.f32 %v194, 0.0078125
  %v298 = vmul.f32 %v196, 0.0078125
  %v299 = vmul.f32 %v198, 0.0078125
  %v300 = vmul.f32 %v200, 0.0078125
  %v301 = vmul.f32 %v202, 0.0078125
  %v302 = vmul.f32 %v204, 0.0078125
  %v303 = vmul.f32 %v206, 0.0078125
  %v304 = vmul.f32 %v208, 0.0078125
  %v305 = vmul.f32 %v210, 0.0078125
  %v306 = vmul.f32 %v212, 0.0078125
  %v307 = vmul.f32 %v214, 0.0078125
  %v308 = vmul.f32 %v216, 0.0078125
  %v309 = vmul.f32 %v218, 0.0078125
  %v310 = vmul.f32 %v220, 0.0078125
  %v311 = vmul.f32 %v222, 0.0078125
  %v312 = vmul.f32 %v224, 0.0078125
  %v313 = vmul.f32 %v226, 0.0078125
  %v314 = vmul.f32 %v228, 0.0078125
  %v315 = vmul.f32 %v230, 0.0078125
  %v316 = vmul.f32 %v232, 0.0078125
  %v317 = vmul.f32 %v234, 0.0078125
  %v318 = vmul.f32 %v236, 0.0078125
  %v319 = vmul.f32 %v238, 0.0078125
  %v320 = vmul.f32 %v240, 0.0078125
  %v321 = vmul.f32 %v242, 0.0078125
  %v322 = vmul.f32 %v244, 0.0078125
  %v323 = vmul.f32 %v246, 0.0078125
  %v324 = vmul.f32 %v248, 0.0078125
  %v325 = vmul.f32 %v250, 0.0078125
  %v326 = vmul.f32 %v252, 0.0078125
  %v327 = vmul.f32 %v254, 0.0078125
  %v328 = vmul.f32 %v256, 0.0078125
  %v329 = vmul.f32 %v258, 0.0078125
  %v330 = vmul.f32 %v260, 0.0078125
  %v331 = vmul.f32 %v262, 0.0078125
  %v332 = vmul.f32 %v264, 0.0078125
  %v333 = vmul.f32 %v266, 0.0078125
  %v334 = vmul.f32 %v268, 0.0078125
  %v335 = vmul.f32 %v270, 0.0078125
  %v336 = vmul.f32 %v272, 0.0078125
  %v337 = vsub.f32 %v81, %v273
  %v338 = vsub.f32 %v82, %v274
  %v339 = vsub.f32 %v83, %v275
  %v340 = vsub.f32 %v84, %v276
  %v341 = vsub.f32 %v85, %v277
  %v342 = vsub.f32 %v86, %v278
  %v343 = vsub.f32 %v87, %v279
  %v344 = vsub.f32 %v88, %v280
  %v345 = vsub.f32 %v89, %v281
  %v346 = vsub.f32 %v90, %v282
  %v347 = vsub.f32 %v91, %v283
  %v348 = vsub.f32 %v92, %v284
  %v349 = vsub.f32 %v93, %v285
  %v350 = vsub.f32 %v94, %v286
  %v351 = vsub.f32 %v95, %v287
  %v352 = vsub.f32 %v96, %v288
  %v353 = vsub.f32 %v97, %v289
  %v354 = vsub.f32 %v98, %v290
  %v355 = vsub.f32 %v99, %v291
  %v356 = vsub.f32 %v100, %v292
  %v357 = vsub.f32 %v101, %v293
  %v358 = vsub.f32 %v102, %v294
  %v359 = vsub.f32 %v103, %v295
  %v360 = vsub.f32 %v104, %v296
  %v361 = vsub.f32 %v105, %v297
  %v362 = vsub.f32 %v106, %v298
  %v363 = vsub.f32 %v107, %v299
  %v364 = vsub.f32 %v108, %v300
  %v365 = vsub.f32 %v109, %v301
  %v366 = vsub.f32 %v110, %v302
  %v367 = vsub.f32 %v111, %v303
  %v368 = vsub.f32 %v112, %v304
  %v369 = vsub.f32 %v113, %v305
  %v370 = vsub.f32 %v114, %v306
  %v371 = vsub.f32 %v115, %v307
  %v372 = vsub.f32 %v116, %v308
  %v373 = vsub.f32 %v117, %v309
  %v374 = vsub.f32 %v118, %v310
  %v375 = vsub.f32 %v119, %v311
  %v376 = vsub.f32 %v120, %v312
  %v377 = vsub.f32 %v121, %v313
  %v378 = vsub.f32 %v122, %v314
  %v379 = vsub.f32 %v123, %v315
  %v380 = vsub.f32 %v124, %v316
  %v381 = vsub.f32 %v125, %v317
  %v382 = vsub.f32 %v126, %v318
  %v383 = vsub.f32 %v127, %v319
  %v384 = vsub.f32 %v128, %v320
  %v385 = vsub.f32 %v129, %v321
  %v386 = vsub.f32 %v130, %v322
  %v387 = vsub.f32 %v131, %v323
  %v388 = vsub.f32 %v132, %v324
  %v389 = vsub.f32 %v133, %v325
  %v390 = vsub.f32 %v134, %v326
  %v391 = vsub.f32 %v135, %v327
  %v392 = vsub.f32 %v136, %v328
  %v393 = vsub.f32 %v137, %v329
  %v394 = vsub.f32 %v138, %v330
  %v395 = vsub.f32 %v139, %v331
  %v396 = vsub.f32 %v140, %v332
  %v397 = vsub.f32 %v141, %v333
  %v398 = vsub.f32 %v142, %v334
  %v399 = vsub.f32 %v143, %v335
  %v400 = vsub.f32 %v144, %v336
  %v401 = vmul.f32 %v337, %v337
  %v402 = vmul.f32 %v338, %v338
  %v403 = vmul.f32 %v339, %v339
  %v404 = vmul.f32 %v340, %v340
  %v405 = vmul.f32 %v341, %v341
  %v406 = vmul.f32 %v342, %v342
  %v407 = vmul.f32 %v343, %v343
  %v408 = vmul.f32 %v344, %v344
  %v409 = vmul.f32 %v345, %v345
  %v410 = vmul.f32 %v346, %v346
  %v411 = vmul.f32 %v347, %v347
  %v412 = vmul.f32 %v348, %v348
  %v413 = vmul.f32 %v349, %v349
  %v414 = vmul.f32 %v350, %v350
  %v415 = vmul.f32 %v351, %v351
  %v416 = vmul.f32 %v352, %v352
  %v417 = vmul.f32 %v353, %v353
  %v418 = vmul.f32 %v354, %v354
  %v419 = vmul.f32 %v355, %v355
  %v420 = vmul.f32 %v356, %v356
  %v421 = vmul.f32 %v357, %v357
  %v422 = vmul.f32 %v358, %v358
  %v423 = vmul.f32 %v359, %v359
  %v424 = vmul.f32 %v360, %v360
  %v425 = vmul.f32 %v361, %v361
  %v426 = vmul.f32 %v362, %v362
  %v427 = vmul.f32 %v363, %v363
  %v428 = vmul.f32 %v364, %v364
  %v429 = vmul.f32 %v365, %v365
  %v430 = vmul.f32 %v366, %v366
  %v431 = vmul.f32 %v367, %v367
  %v432 = vmul.f32 %v368, %v368
  %v433 = vmul.f32 %v369, %v369
  %v434 = vmul.f32 %v370, %v370
  %v435 = vmul.f32 %v371, %v371
  %v436 = vmul.f32 %v372, %v372
  %v437 = vmul.f32 %v373, %v373
  %v438 = vmul.f32 %v374, %v374
  %v439 = vmul.f32 %v375, %v375
  %v440 = vmul.f32 %v376, %v376
  %v441 = vmul.f32 %v377, %v377
  %v442 = vmul.f32 %v378, %v378
  %v443 = vmul.f32 %v379, %v379
  %v444 = vmul.f32 %v380, %v380
  %v445 = vmul.f32 %v381, %v381
  %v446 = vmul.f32 %v382, %v382
  %v447 = vmul.f32 %v383, %v383
  %v448 = vmul.f32 %v384, %v384
  %v449 = vmul.f32 %v385, %v385
  %v450 = vmul.f32 %v386, %v386
  %v451 = vmul.f32 %v387, %v387
  %v452 = vmul.f32 %v388, %v388
  %v453 = vmul.f32 %v389, %v389
  %v454 = vmul.f32 %v390, %v390
  %v455 = vmul.f32 %v391, %v391
  %v456 = vmul.f32 %v392, %v392
  %v457 = vmul.f32 %v393, %v393
  %v458 = vmul.f32 %v394, %v394
  %v459 = vmul.f32 %v395, %v395
  %v460 = vmul.f32 %v396, %v396
  %v461 = vmul.f32 %v397, %v397
  %v462 = vmul.f32 %v398, %v398
  %v463 = vmul.f32 %v399, %v399
  %v464 = vmul.f32 %v400, %v400
  %465 = vadd.xlane.f32.xlu0 %v401
  %v466 = vpop.xlane.xlu0 %465
  %467 = vadd.xlane.f32.xlu0 %v402
  %v468 = vpop.xlane.xlu0 %467
  %469 = vadd.xlane.f32.xlu0 %v403
  %v470 = vpop.xlane.xlu0 %469
  %471 = vadd.xlane.f32.xlu0 %v404
  %v472 = vpop.xlane.xlu0 %471
  %473 = vadd.xlane.f32.xlu0 %v405
  %v474 = vpop.xlane.xlu0 %473
  %475 = vadd.xlane.f32.xlu0 %v406
  %v476 = vpop.xlane.xlu0 %475
  %477 = vadd.xlane.f32.xlu0 %v407
  %v478 = vpop.xlane.xlu0 %477
  %479 = vadd.xlane.f32.xlu0 %v408
  %v480 = vpop.xlane.xlu0 %479
  %481 = vadd.xlane.f32.xlu0 %v409
  %v482 = vpop.xlane.xlu0 %481
  %483 = vadd.xlane.f32.xlu0 %v410
  %v484 = vpop.xlane.xlu0 %483
  %485 = vadd.xlane.f32.xlu0 %v411
  %v486 = vpop.xlane.xlu0 %485
  %487 = vadd.xlane.f32.xlu0 %v412
  %v488 = vpop.xlane.xlu0 %487
  %489 = vadd.xlane.f32.xlu0 %v413
  %v490 = vpop.xlane.xlu0 %489
  %491 = vadd.xlane.f32.xlu0 %v414
  %v492 = vpop.xlane.xlu0 %491
  %493 = vadd.xlane.f32.xlu0 %v415
  %v494 = vpop.xlane.xlu0 %493
  %495 = vadd.xlane.f32.xlu0 %v416
  %v496 = vpop.xlane.xlu0 %495
  %497 = vadd.xlane.f32.xlu0 %v417
  %v498 = vpop.xlane.xlu0 %497
  %499 = vadd.xlane.f32.xlu0 %v418
  %v500 = vpop.xlane.xlu0 %499
  %501 = vadd.xlane.f32.xlu0 %v419
  %v502 = vpop.xlane.xlu0 %501
  %503 = vadd.xlane.f32.xlu0 %v420
  %v504 = vpop.xlane.xlu0 %503
  %505 = vadd.xlane.f32.xlu0 %v421
  %v506 = vpop.xlane.xlu0 %505
  %507 = vadd.xlane.f32.xlu0 %v422
  %v508 = vpop.xlane.xlu0 %507
  %509 = vadd.xlane.f32.xlu0 %v423
  %v510 = vpop.xlane.xlu0 %509
  %511 = vadd.xlane.f32.xlu0 %v424
  %v512 = vpop.xlane.xlu0 %511
  %513 = vadd.xlane.f32.xlu0 %v425
  %v514 = vpop.xlane.xlu0 %513
  %515 = vadd.xlane.f32.xlu0 %v426
  %v516 = vpop.xlane.xlu0 %515
  %517 = vadd.xlane.f32.xlu0 %v427
  %v518 = vpop.xlane.xlu0 %517
  %519 = vadd.xlane.f32.xlu0 %v428
  %v520 = vpop.xlane.xlu0 %519
  %521 = vadd.xlane.f32.xlu0 %v429
  %v522 = vpop.xlane.xlu0 %521
  %523 = vadd.xlane.f32.xlu0 %v430
  %v524 = vpop.xlane.xlu0 %523
  %525 = vadd.xlane.f32.xlu0 %v431
  %v526 = vpop.xlane.xlu0 %525
  %527 = vadd.xlane.f32.xlu0 %v432
  %v528 = vpop.xlane.xlu0 %527
  %529 = vadd.xlane.f32.xlu0 %v433
  %v530 = vpop.xlane.xlu0 %529
  %531 = vadd.xlane.f32.xlu0 %v434
  %v532 = vpop.xlane.xlu0 %531
  %533 = vadd.xlane.f32.xlu0 %v435
  %v534 = vpop.xlane.xlu0 %533
  %535 = vadd.xlane.f32.xlu0 %v436
  %v536 = vpop.xlane.xlu0 %535
  %537 = vadd.xlane.f32.xlu0 %v437
  %v538 = vpop.xlane.xlu0 %537
  %539 = vadd.xlane.f32.xlu0 %v438
  %v540 = vpop.xlane.xlu0 %539
  %541 = vadd.xlane.f32.xlu0 %v439
  %v542 = vpop.xlane.xlu0 %541
  %543 = vadd.xlane.f32.xlu0 %v440
  %v544 = vpop.xlane.xlu0 %543
  %545 = vadd.xlane.f32.xlu0 %v441
  %v546 = vpop.xlane.xlu0 %545
  %547 = vadd.xlane.f32.xlu0 %v442
  %v548 = vpop.xlane.xlu0 %547
  %549 = vadd.xlane.f32.xlu0 %v443
  %v550 = vpop.xlane.xlu0 %549
  %551 = vadd.xlane.f32.xlu0 %v444
  %v552 = vpop.xlane.xlu0 %551
  %553 = vadd.xlane.f32.xlu0 %v445
  %v554 = vpop.xlane.xlu0 %553
  %555 = vadd.xlane.f32.xlu0 %v446
  %v556 = vpop.xlane.xlu0 %555
  %557 = vadd.xlane.f32.xlu0 %v447
  %v558 = vpop.xlane.xlu0 %557
  %559 = vadd.xlane.f32.xlu0 %v448
  %v560 = vpop.xlane.xlu0 %559
  %561 = vadd.xlane.f32.xlu0 %v449
  %v562 = vpop.xlane.xlu0 %561
  %563 = vadd.xlane.f32.xlu0 %v450
  %v564 = vpop.xlane.xlu0 %563
  %565 = vadd.xlane.f32.xlu0 %v451
  %v566 = vpop.xlane.xlu0 %565
  %567 = vadd.xlane.f32.xlu0 %v452
  %v568 = vpop.xlane.xlu0 %567
  %569 = vadd.xlane.f32.xlu0 %v453
  %v570 = vpop.xlane.xlu0 %569
  %571 = vadd.xlane.f32.xlu0 %v454
  %v572 = vpop.xlane.xlu0 %571
  %573 = vadd.xlane.f32.xlu0 %v455
  %v574 = vpop.xlane.xlu0 %573
  %575 = vadd.xlane.f32.xlu0 %v456
  %v576 = vpop.xlane.xlu0 %575
  %577 = vadd.xlane.f32.xlu0 %v457
  %v578 = vpop.xlane.xlu0 %577
  %579 = vadd.xlane.f32.xlu0 %v458
  %v580 = vpop.xlane.xlu0 %579
  %581 = vadd.xlane.f32.xlu0 %v459
  %v582 = vpop.xlane.xlu0 %581
  %583 = vadd.xlane.f32.xlu0 %v460
  %v584 = vpop.xlane.xlu0 %583
  %585 = vadd.xlane.f32.xlu0 %v461
  %v586 = vpop.xlane.xlu0 %585
  %587 = vadd.xlane.f32.xlu0 %v462
  %v588 = vpop.xlane.xlu0 %587
  %589 = vadd.xlane.f32.xlu0 %v463
  %v590 = vpop.xlane.xlu0 %589
  %591 = vadd.xlane.f32.xlu0 %v464
  %v592 = vpop.xlane.xlu0 %591
  %v593 = vmul.f32 %v466, 0.0078125
  %v594 = vmul.f32 %v468, 0.0078125
  %v595 = vmul.f32 %v470, 0.0078125
  %v596 = vmul.f32 %v472, 0.0078125
  %v597 = vmul.f32 %v474, 0.0078125
  %v598 = vmul.f32 %v476, 0.0078125
  %v599 = vmul.f32 %v478, 0.0078125
  %v600 = vmul.f32 %v480, 0.0078125
  %v601 = vmul.f32 %v482, 0.0078125
  %v602 = vmul.f32 %v484, 0.0078125
  %v603 = vmul.f32 %v486, 0.0078125
  %v604 = vmul.f32 %v488, 0.0078125
  %v605 = vmul.f32 %v490, 0.0078125
  %v606 = vmul.f32 %v492, 0.0078125
  %v607 = vmul.f32 %v494, 0.0078125
  %v608 = vmul.f32 %v496, 0.0078125
  %v609 = vmul.f32 %v498, 0.0078125
  %v610 = vmul.f32 %v500, 0.0078125
  %v611 = vmul.f32 %v502, 0.0078125
  %v612 = vmul.f32 %v504, 0.0078125
  %v613 = vmul.f32 %v506, 0.0078125
  %v614 = vmul.f32 %v508, 0.0078125
  %v615 = vmul.f32 %v510, 0.0078125
  %v616 = vmul.f32 %v512, 0.0078125
  %v617 = vmul.f32 %v514, 0.0078125
  %v618 = vmul.f32 %v516, 0.0078125
  %v619 = vmul.f32 %v518, 0.0078125
  %v620 = vmul.f32 %v520, 0.0078125
  %v621 = vmul.f32 %v522, 0.0078125
  %v622 = vmul.f32 %v524, 0.0078125
  %v623 = vmul.f32 %v526, 0.0078125
  %v624 = vmul.f32 %v528, 0.0078125
  %v625 = vmul.f32 %v530, 0.0078125
  %v626 = vmul.f32 %v532, 0.0078125
  %v627 = vmul.f32 %v534, 0.0078125
  %v628 = vmul.f32 %v536, 0.0078125
  %v629 = vmul.f32 %v538, 0.0078125
  %v630 = vmul.f32 %v540, 0.0078125
  %v631 = vmul.f32 %v542, 0.0078125
  %v632 = vmul.f32 %v544, 0.0078125
  %v633 = vmul.f32 %v546, 0.0078125
  %v634 = vmul.f32 %v548, 0.0078125
  %v635 = vmul.f32 %v550, 0.0078125
  %v636 = vmul.f32 %v552, 0.0078125
  %v637 = vmul.f32 %v554, 0.0078125
  %v638 = vmul.f32 %v556, 0.0078125
  %v639 = vmul.f32 %v558, 0.0078125
  %v640 = vmul.f32 %v560, 0.0078125
  %v641 = vmul.f32 %v562, 0.0078125
  %v642 = vmul.f32 %v564, 0.0078125
  %v643 = vmul.f32 %v566, 0.0078125
  %v644 = vmul.f32 %v568, 0.0078125
  %v645 = vmul.f32 %v570, 0.0078125
  %v646 = vmul.f32 %v572, 0.0078125
  %v647 = vmul.f32 %v574, 0.0078125
  %v648 = vmul.f32 %v576, 0.0078125
  %v649 = vmul.f32 %v578, 0.0078125
  %v650 = vmul.f32 %v580, 0.0078125
  %v651 = vmul.f32 %v582, 0.0078125
  %v652 = vmul.f32 %v584, 0.0078125
  %v653 = vmul.f32 %v586, 0.0078125
  %v654 = vmul.f32 %v588, 0.0078125
  %v655 = vmul.f32 %v590, 0.0078125
  %v656 = vmul.f32 %v592, 0.0078125
  %v657 = vadd.f32 %v593, 1e-05
  %v658 = vadd.f32 %v594, 1e-05
  %v659 = vadd.f32 %v595, 1e-05
  %v660 = vadd.f32 %v596, 1e-05
  %v661 = vadd.f32 %v597, 1e-05
  %v662 = vadd.f32 %v598, 1e-05
  %v663 = vadd.f32 %v599, 1e-05
  %v664 = vadd.f32 %v600, 1e-05
  %v665 = vadd.f32 %v601, 1e-05
  %v666 = vadd.f32 %v602, 1e-05
  %v667 = vadd.f32 %v603, 1e-05
  %v668 = vadd.f32 %v604, 1e-05
  %v669 = vadd.f32 %v605, 1e-05
  %v670 = vadd.f32 %v606, 1e-05
  %v671 = vadd.f32 %v607, 1e-05
  %v672 = vadd.f32 %v608, 1e-05
  %v673 = vadd.f32 %v609, 1e-05
  %v674 = vadd.f32 %v610, 1e-05
  %v675 = vadd.f32 %v611, 1e-05
  %v676 = vadd.f32 %v612, 1e-05
  %v677 = vadd.f32 %v613, 1e-05
  %v678 = vadd.f32 %v614, 1e-05
  %v679 = vadd.f32 %v615, 1e-05
  %v680 = vadd.f32 %v616, 1e-05
  %v681 = vadd.f32 %v617, 1e-05
  %v682 = vadd.f32 %v618, 1e-05
  %v683 = vadd.f32 %v619, 1e-05
  %v684 = vadd.f32 %v620, 1e-05
  %v685 = vadd.f32 %v621, 1e-05
  %v686 = vadd.f32 %v622, 1e-05
  %v687 = vadd.f32 %v623, 1e-05
  %v688 = vadd.f32 %v624, 1e-05
  %v689 = vadd.f32 %v625, 1e-05
  %v690 = vadd.f32 %v626, 1e-05
  %v691 = vadd.f32 %v627, 1e-05
  %v692 = vadd.f32 %v628, 1e-05
  %v693 = vadd.f32 %v629, 1e-05
  %v694 = vadd.f32 %v630, 1e-05
  %v695 = vadd.f32 %v631, 1e-05
  %v696 = vadd.f32 %v632, 1e-05
  %v697 = vadd.f32 %v633, 1e-05
  %v698 = vadd.f32 %v634, 1e-05
  %v699 = vadd.f32 %v635, 1e-05
  %v700 = vadd.f32 %v636, 1e-05
  %v701 = vadd.f32 %v637, 1e-05
  %v702 = vadd.f32 %v638, 1e-05
  %v703 = vadd.f32 %v639, 1e-05
  %v704 = vadd.f32 %v640, 1e-05
  %v705 = vadd.f32 %v641, 1e-05
  %v706 = vadd.f32 %v642, 1e-05
  %v707 = vadd.f32 %v643, 1e-05
  %v708 = vadd.f32 %v644, 1e-05
  %v709 = vadd.f32 %v645, 1e-05
  %v710 = vadd.f32 %v646, 1e-05
  %v711 = vadd.f32 %v647, 1e-05
  %v712 = vadd.f32 %v648, 1e-05
  %v713 = vadd.f32 %v649, 1e-05
  %v714 = vadd.f32 %v650, 1e-05
  %v715 = vadd.f32 %v651, 1e-05
  %v716 = vadd.f32 %v652, 1e-05
  %v717 = vadd.f32 %v653, 1e-05
  %v718 = vadd.f32 %v654, 1e-05
  %v719 = vadd.f32 %v655, 1e-05
  %v720 = vadd.f32 %v656, 1e-05
  %v721 = vrsqrt.pop %v657
  %v722 = vmul.f32 %v721, %v657
  %v723 = vmul.f32 %v722, %v721
  %v724 = vmul.f32 0.5, %v723
  %v725 = vsub.f32 1.5, %v724
  %v726 = vmul.f32 %v721, %v725
  %vm727 = vweird.f32 %v657
  %vm728 = vweird.f32 %v721
  %vm729 = vmor %vm727, %vm728
  %v730 = vsel %vm729, %v721, %v726
  %v731 = vrsqrt.pop %v658
  %v732 = vmul.f32 %v731, %v658
  %v733 = vmul.f32 %v732, %v731
  %v734 = vmul.f32 0.5, %v733
  %v735 = vsub.f32 1.5, %v734
  %v736 = vmul.f32 %v731, %v735
  %vm737 = vweird.f32 %v658
  %vm738 = vweird.f32 %v731
  %vm739 = vmor %vm737, %vm738
  %v740 = vsel %vm739, %v731, %v736
  %v741 = vrsqrt.pop %v659
  %v742 = vmul.f32 %v741, %v659
  %v743 = vmul.f32 %v742, %v741
  %v744 = vmul.f32 0.5, %v743
  %v745 = vsub.f32 1.5, %v744
  %v746 = vmul.f32 %v741, %v745
  %vm747 = vweird.f32 %v659
  %vm748 = vweird.f32 %v741
  %vm749 = vmor %vm747, %vm748
  %v750 = vsel %vm749, %v741, %v746
  %v751 = vrsqrt.pop %v660
  %v752 = vmul.f32 %v751, %v660
  %v753 = vmul.f32 %v752, %v751
  %v754 = vmul.f32 0.5, %v753
  %v755 = vsub.f32 1.5, %v754
  %v756 = vmul.f32 %v751, %v755
  %vm757 = vweird.f32 %v660
  %vm758 = vweird.f32 %v751
  %vm759 = vmor %vm757, %vm758
  %v760 = vsel %vm759, %v751, %v756
  %v761 = vrsqrt.pop %v661
  %v762 = vmul.f32 %v761, %v661
  %v763 = vmul.f32 %v762, %v761
  %v764 = vmul.f32 0.5, %v763
  %v765 = vsub.f32 1.5, %v764
  %v766 = vmul.f32 %v761, %v765
  %vm767 = vweird.f32 %v661
  %vm768 = vweird.f32 %v761
  %vm769 = vmor %vm767, %vm768
  %v770 = vsel %vm769, %v761, %v766
  %v771 = vrsqrt.pop %v662
  %v772 = vmul.f32 %v771, %v662
  %v773 = vmul.f32 %v772, %v771
  %v774 = vmul.f32 0.5, %v773
  %v775 = vsub.f32 1.5, %v774
  %v776 = vmul.f32 %v771, %v775
  %vm777 = vweird.f32 %v662
  %vm778 = vweird.f32 %v771
  %vm779 = vmor %vm777, %vm778
  %v780 = vsel %vm779, %v771, %v776
  %v781 = vrsqrt.pop %v663
  %v782 = vmul.f32 %v781, %v663
  %v783 = vmul.f32 %v782, %v781
  %v784 = vmul.f32 0.5, %v783
  %v785 = vsub.f32 1.5, %v784
  %v786 = vmul.f32 %v781, %v785
  %vm787 = vweird.f32 %v663
  %vm788 = vweird.f32 %v781
  %vm789 = vmor %vm787, %vm788
  %v790 = vsel %vm789, %v781, %v786
  %v791 = vrsqrt.pop %v664
  %v792 = vmul.f32 %v791, %v664
  %v793 = vmul.f32 %v792, %v791
  %v794 = vmul.f32 0.5, %v793
  %v795 = vsub.f32 1.5, %v794
  %v796 = vmul.f32 %v791, %v795
  %vm797 = vweird.f32 %v664
  %vm798 = vweird.f32 %v791
  %vm799 = vmor %vm797, %vm798
  %v800 = vsel %vm799, %v791, %v796
  %v801 = vrsqrt.pop %v665
  %v802 = vmul.f32 %v801, %v665
  %v803 = vmul.f32 %v802, %v801
  %v804 = vmul.f32 0.5, %v803
  %v805 = vsub.f32 1.5, %v804
  %v806 = vmul.f32 %v801, %v805
  %vm807 = vweird.f32 %v665
  %vm808 = vweird.f32 %v801
  %vm809 = vmor %vm807, %vm808
  %v810 = vsel %vm809, %v801, %v806
  %v811 = vrsqrt.pop %v666
  %v812 = vmul.f32 %v811, %v666
  %v813 = vmul.f32 %v812, %v811
  %v814 = vmul.f32 0.5, %v813
  %v815 = vsub.f32 1.5, %v814
  %v816 = vmul.f32 %v811, %v815
  %vm817 = vweird.f32 %v666
  %vm818 = vweird.f32 %v811
  %vm819 = vmor %vm817, %vm818
  %v820 = vsel %vm819, %v811, %v816
  %v821 = vrsqrt.pop %v667
  %v822 = vmul.f32 %v821, %v667
  %v823 = vmul.f32 %v822, %v821
  %v824 = vmul.f32 0.5, %v823
  %v825 = vsub.f32 1.5, %v824
  %v826 = vmul.f32 %v821, %v825
  %vm827 = vweird.f32 %v667
  %vm828 = vweird.f32 %v821
  %vm829 = vmor %vm827, %vm828
  %v830 = vsel %vm829, %v821, %v826
  %v831 = vrsqrt.pop %v668
  %v832 = vmul.f32 %v831, %v668
  %v833 = vmul.f32 %v832, %v831
  %v834 = vmul.f32 0.5, %v833
  %v835 = vsub.f32 1.5, %v834
  %v836 = vmul.f32 %v831, %v835
  %vm837 = vweird.f32 %v668
  %vm838 = vweird.f32 %v831
  %vm839 = vmor %vm837, %vm838
  %v840 = vsel %vm839, %v831, %v836
  %v841 = vrsqrt.pop %v669
  %v842 = vmul.f32 %v841, %v669
  %v843 = vmul.f32 %v842, %v841
  %v844 = vmul.f32 0.5, %v843
  %v845 = vsub.f32 1.5, %v844
  %v846 = vmul.f32 %v841, %v845
  %vm847 = vweird.f32 %v669
  %vm848 = vweird.f32 %v841
  %vm849 = vmor %vm847, %vm848
  %v850 = vsel %vm849, %v841, %v846
  %v851 = vrsqrt.pop %v670
  %v852 = vmul.f32 %v851, %v670
  %v853 = vmul.f32 %v852, %v851
  %v854 = vmul.f32 0.5, %v853
  %v855 = vsub.f32 1.5, %v854
  %v856 = vmul.f32 %v851, %v855
  %vm857 = vweird.f32 %v670
  %vm858 = vweird.f32 %v851
  %vm859 = vmor %vm857, %vm858
  %v860 = vsel %vm859, %v851, %v856
  %v861 = vrsqrt.pop %v671
  %v862 = vmul.f32 %v861, %v671
  %v863 = vmul.f32 %v862, %v861
  %v864 = vmul.f32 0.5, %v863
  %v865 = vsub.f32 1.5, %v864
  %v866 = vmul.f32 %v861, %v865
  %vm867 = vweird.f32 %v671
  %vm868 = vweird.f32 %v861
  %vm869 = vmor %vm867, %vm868
  %v870 = vsel %vm869, %v861, %v866
  %v871 = vrsqrt.pop %v672
  %v872 = vmul.f32 %v871, %v672
  %v873 = vmul.f32 %v872, %v871
  %v874 = vmul.f32 0.5, %v873
  %v875 = vsub.f32 1.5, %v874
  %v876 = vmul.f32 %v871, %v875
  %vm877 = vweird.f32 %v672
  %vm878 = vweird.f32 %v871
  %vm879 = vmor %vm877, %vm878
  %v880 = vsel %vm879, %v871, %v876
  %v881 = vrsqrt.pop %v673
  %v882 = vmul.f32 %v881, %v673
  %v883 = vmul.f32 %v882, %v881
  %v884 = vmul.f32 0.5, %v883
  %v885 = vsub.f32 1.5, %v884
  %v886 = vmul.f32 %v881, %v885
  %vm887 = vweird.f32 %v673
  %vm888 = vweird.f32 %v881
  %vm889 = vmor %vm887, %vm888
  %v890 = vsel %vm889, %v881, %v886
  %v891 = vrsqrt.pop %v674
  %v892 = vmul.f32 %v891, %v674
  %v893 = vmul.f32 %v892, %v891
  %v894 = vmul.f32 0.5, %v893
  %v895 = vsub.f32 1.5, %v894
  %v896 = vmul.f32 %v891, %v895
  %vm897 = vweird.f32 %v674
  %vm898 = vweird.f32 %v891
  %vm899 = vmor %vm897, %vm898
  %v900 = vsel %vm899, %v891, %v896
  %v901 = vrsqrt.pop %v675
  %v902 = vmul.f32 %v901, %v675
  %v903 = vmul.f32 %v902, %v901
  %v904 = vmul.f32 0.5, %v903
  %v905 = vsub.f32 1.5, %v904
  %v906 = vmul.f32 %v901, %v905
  %vm907 = vweird.f32 %v675
  %vm908 = vweird.f32 %v901
  %vm909 = vmor %vm907, %vm908
  %v910 = vsel %vm909, %v901, %v906
  %v911 = vrsqrt.pop %v676
  %v912 = vmul.f32 %v911, %v676
  %v913 = vmul.f32 %v912, %v911
  %v914 = vmul.f32 0.5, %v913
  %v915 = vsub.f32 1.5, %v914
  %v916 = vmul.f32 %v911, %v915
  %vm917 = vweird.f32 %v676
  %vm918 = vweird.f32 %v911
  %vm919 = vmor %vm917, %vm918
  %v920 = vsel %vm919, %v911, %v916
  %v921 = vrsqrt.pop %v677
  %v922 = vmul.f32 %v921, %v677
  %v923 = vmul.f32 %v922, %v921
  %v924 = vmul.f32 0.5, %v923
  %v925 = vsub.f32 1.5, %v924
  %v926 = vmul.f32 %v921, %v925
  %vm927 = vweird.f32 %v677
  %vm928 = vweird.f32 %v921
  %vm929 = vmor %vm927, %vm928
  %v930 = vsel %vm929, %v921, %v926
  %v931 = vrsqrt.pop %v678
  %v932 = vmul.f32 %v931, %v678
  %v933 = vmul.f32 %v932, %v931
  %v934 = vmul.f32 0.5, %v933
  %v935 = vsub.f32 1.5, %v934
  %v936 = vmul.f32 %v931, %v935
  %vm937 = vweird.f32 %v678
  %vm938 = vweird.f32 %v931
  %vm939 = vmor %vm937, %vm938
  %v940 = vsel %vm939, %v931, %v936
  %v941 = vrsqrt.pop %v679
  %v942 = vmul.f32 %v941, %v679
  %v943 = vmul.f32 %v942, %v941
  %v944 = vmul.f32 0.5, %v943
  %v945 = vsub.f32 1.5, %v944
  %v946 = vmul.f32 %v941, %v945
  %vm947 = vweird.f32 %v679
  %vm948 = vweird.f32 %v941
  %vm949 = vmor %vm947, %vm948
  %v950 = vsel %vm949, %v941, %v946
  %v951 = vrsqrt.pop %v680
  %v952 = vmul.f32 %v951, %v680
  %v953 = vmul.f32 %v952, %v951
  %v954 = vmul.f32 0.5, %v953
  %v955 = vsub.f32 1.5, %v954
  %v956 = vmul.f32 %v951, %v955
  %vm957 = vweird.f32 %v680
  %vm958 = vweird.f32 %v951
  %vm959 = vmor %vm957, %vm958
  %v960 = vsel %vm959, %v951, %v956
  %v961 = vrsqrt.pop %v681
  %v962 = vmul.f32 %v961, %v681
  %v963 = vmul.f32 %v962, %v961
  %v964 = vmul.f32 0.5, %v963
  %v965 = vsub.f32 1.5, %v964
  %v966 = vmul.f32 %v961, %v965
  %vm967 = vweird.f32 %v681
  %vm968 = vweird.f32 %v961
  %vm969 = vmor %vm967, %vm968
  %v970 = vsel %vm969, %v961, %v966
  %v971 = vrsqrt.pop %v682
  %v972 = vmul.f32 %v971, %v682
  %v973 = vmul.f32 %v972, %v971
  %v974 = vmul.f32 0.5, %v973
  %v975 = vsub.f32 1.5, %v974
  %v976 = vmul.f32 %v971, %v975
  %vm977 = vweird.f32 %v682
  %vm978 = vweird.f32 %v971
  %vm979 = vmor %vm977, %vm978
  %v980 = vsel %vm979, %v971, %v976
  %v981 = vrsqrt.pop %v683
  %v982 = vmul.f32 %v981, %v683
  %v983 = vmul.f32 %v982, %v981
  %v984 = vmul.f32 0.5, %v983
  %v985 = vsub.f32 1.5, %v984
  %v986 = vmul.f32 %v981, %v985
  %vm987 = vweird.f32 %v683
  %vm988 = vweird.f32 %v981
  %vm989 = vmor %vm987, %vm988
  %v990 = vsel %vm989, %v981, %v986
  %v991 = vrsqrt.pop %v684
  %v992 = vmul.f32 %v991, %v684
  %v993 = vmul.f32 %v992, %v991
  %v994 = vmul.f32 0.5, %v993
  %v995 = vsub.f32 1.5, %v994
  %v996 = vmul.f32 %v991, %v995
  %vm997 = vweird.f32 %v684
  %vm998 = vweird.f32 %v991
  %vm999 = vmor %vm997, %vm998
  %v1000 = vsel %vm999, %v991, %v996
  %v1001 = vrsqrt.pop %v685
  %v1002 = vmul.f32 %v1001, %v685
  %v1003 = vmul.f32 %v1002, %v1001
  %v1004 = vmul.f32 0.5, %v1003
  %v1005 = vsub.f32 1.5, %v1004
  %v1006 = vmul.f32 %v1001, %v1005
  %vm1007 = vweird.f32 %v685
  %vm1008 = vweird.f32 %v1001
  %vm1009 = vmor %vm1007, %vm1008
  %v1010 = vsel %vm1009, %v1001, %v1006
  %v1011 = vrsqrt.pop %v686
  %v1012 = vmul.f32 %v1011, %v686
  %v1013 = vmul.f32 %v1012, %v1011
  %v1014 = vmul.f32 0.5, %v1013
  %v1015 = vsub.f32 1.5, %v1014
  %v1016 = vmul.f32 %v1011, %v1015
  %vm1017 = vweird.f32 %v686
  %vm1018 = vweird.f32 %v1011
  %vm1019 = vmor %vm1017, %vm1018
  %v1020 = vsel %vm1019, %v1011, %v1016
  %v1021 = vrsqrt.pop %v687
  %v1022 = vmul.f32 %v1021, %v687
  %v1023 = vmul.f32 %v1022, %v1021
  %v1024 = vmul.f32 0.5, %v1023
  %v1025 = vsub.f32 1.5, %v1024
  %v1026 = vmul.f32 %v1021, %v1025
  %vm1027 = vweird.f32 %v687
  %vm1028 = vweird.f32 %v1021
  %vm1029 = vmor %vm1027, %vm1028
  %v1030 = vsel %vm1029, %v1021, %v1026
  %v1031 = vrsqrt.pop %v688
  %v1032 = vmul.f32 %v1031, %v688
  %v1033 = vmul.f32 %v1032, %v1031
  %v1034 = vmul.f32 0.5, %v1033
  %v1035 = vsub.f32 1.5, %v1034
  %v1036 = vmul.f32 %v1031, %v1035
  %vm1037 = vweird.f32 %v688
  %vm1038 = vweird.f32 %v1031
  %vm1039 = vmor %vm1037, %vm1038
  %v1040 = vsel %vm1039, %v1031, %v1036
  %v1041 = vrsqrt.pop %v689
  %v1042 = vmul.f32 %v1041, %v689
  %v1043 = vmul.f32 %v1042, %v1041
  %v1044 = vmul.f32 0.5, %v1043
  %v1045 = vsub.f32 1.5, %v1044
  %v1046 = vmul.f32 %v1041, %v1045
  %vm1047 = vweird.f32 %v689
  %vm1048 = vweird.f32 %v1041
  %vm1049 = vmor %vm1047, %vm1048
  %v1050 = vsel %vm1049, %v1041, %v1046
  %v1051 = vrsqrt.pop %v690
  %v1052 = vmul.f32 %v1051, %v690
  %v1053 = vmul.f32 %v1052, %v1051
  %v1054 = vmul.f32 0.5, %v1053
  %v1055 = vsub.f32 1.5, %v1054
  %v1056 = vmul.f32 %v1051, %v1055
  %vm1057 = vweird.f32 %v690
  %vm1058 = vweird.f32 %v1051
  %vm1059 = vmor %vm1057, %vm1058
  %v1060 = vsel %vm1059, %v1051, %v1056
  %v1061 = vrsqrt.pop %v691
  %v1062 = vmul.f32 %v1061, %v691
  %v1063 = vmul.f32 %v1062, %v1061
  %v1064 = vmul.f32 0.5, %v1063
  %v1065 = vsub.f32 1.5, %v1064
  %v1066 = vmul.f32 %v1061, %v1065
  %vm1067 = vweird.f32 %v691
  %vm1068 = vweird.f32 %v1061
  %vm1069 = vmor %vm1067, %vm1068
  %v1070 = vsel %vm1069, %v1061, %v1066
  %v1071 = vrsqrt.pop %v692
  %v1072 = vmul.f32 %v1071, %v692
  %v1073 = vmul.f32 %v1072, %v1071
  %v1074 = vmul.f32 0.5, %v1073
  %v1075 = vsub.f32 1.5, %v1074
  %v1076 = vmul.f32 %v1071, %v1075
  %vm1077 = vweird.f32 %v692
  %vm1078 = vweird.f32 %v1071
  %vm1079 = vmor %vm1077, %vm1078
  %v1080 = vsel %vm1079, %v1071, %v1076
  %v1081 = vrsqrt.pop %v693
  %v1082 = vmul.f32 %v1081, %v693
  %v1083 = vmul.f32 %v1082, %v1081
  %v1084 = vmul.f32 0.5, %v1083
  %v1085 = vsub.f32 1.5, %v1084
  %v1086 = vmul.f32 %v1081, %v1085
  %vm1087 = vweird.f32 %v693
  %vm1088 = vweird.f32 %v1081
  %vm1089 = vmor %vm1087, %vm1088
  %v1090 = vsel %vm1089, %v1081, %v1086
  %v1091 = vrsqrt.pop %v694
  %v1092 = vmul.f32 %v1091, %v694
  %v1093 = vmul.f32 %v1092, %v1091
  %v1094 = vmul.f32 0.5, %v1093
  %v1095 = vsub.f32 1.5, %v1094
  %v1096 = vmul.f32 %v1091, %v1095
  %vm1097 = vweird.f32 %v694
  %vm1098 = vweird.f32 %v1091
  %vm1099 = vmor %vm1097, %vm1098
  %v1100 = vsel %vm1099, %v1091, %v1096
  %v1101 = vrsqrt.pop %v695
  %v1102 = vmul.f32 %v1101, %v695
  %v1103 = vmul.f32 %v1102, %v1101
  %v1104 = vmul.f32 0.5, %v1103
  %v1105 = vsub.f32 1.5, %v1104
  %v1106 = vmul.f32 %v1101, %v1105
  %vm1107 = vweird.f32 %v695
  %vm1108 = vweird.f32 %v1101
  %vm1109 = vmor %vm1107, %vm1108
  %v1110 = vsel %vm1109, %v1101, %v1106
  %v1111 = vrsqrt.pop %v696
  %v1112 = vmul.f32 %v1111, %v696
  %v1113 = vmul.f32 %v1112, %v1111
  %v1114 = vmul.f32 0.5, %v1113
  %v1115 = vsub.f32 1.5, %v1114
  %v1116 = vmul.f32 %v1111, %v1115
  %vm1117 = vweird.f32 %v696
  %vm1118 = vweird.f32 %v1111
  %vm1119 = vmor %vm1117, %vm1118
  %v1120 = vsel %vm1119, %v1111, %v1116
  %v1121 = vrsqrt.pop %v697
  %v1122 = vmul.f32 %v1121, %v697
  %v1123 = vmul.f32 %v1122, %v1121
  %v1124 = vmul.f32 0.5, %v1123
  %v1125 = vsub.f32 1.5, %v1124
  %v1126 = vmul.f32 %v1121, %v1125
  %vm1127 = vweird.f32 %v697
  %vm1128 = vweird.f32 %v1121
  %vm1129 = vmor %vm1127, %vm1128
  %v1130 = vsel %vm1129, %v1121, %v1126
  %v1131 = vrsqrt.pop %v698
  %v1132 = vmul.f32 %v1131, %v698
  %v1133 = vmul.f32 %v1132, %v1131
  %v1134 = vmul.f32 0.5, %v1133
  %v1135 = vsub.f32 1.5, %v1134
  %v1136 = vmul.f32 %v1131, %v1135
  %vm1137 = vweird.f32 %v698
  %vm1138 = vweird.f32 %v1131
  %vm1139 = vmor %vm1137, %vm1138
  %v1140 = vsel %vm1139, %v1131, %v1136
  %v1141 = vrsqrt.pop %v699
  %v1142 = vmul.f32 %v1141, %v699
  %v1143 = vmul.f32 %v1142, %v1141
  %v1144 = vmul.f32 0.5, %v1143
  %v1145 = vsub.f32 1.5, %v1144
  %v1146 = vmul.f32 %v1141, %v1145
  %vm1147 = vweird.f32 %v699
  %vm1148 = vweird.f32 %v1141
  %vm1149 = vmor %vm1147, %vm1148
  %v1150 = vsel %vm1149, %v1141, %v1146
  %v1151 = vrsqrt.pop %v700
  %v1152 = vmul.f32 %v1151, %v700
  %v1153 = vmul.f32 %v1152, %v1151
  %v1154 = vmul.f32 0.5, %v1153
  %v1155 = vsub.f32 1.5, %v1154
  %v1156 = vmul.f32 %v1151, %v1155
  %vm1157 = vweird.f32 %v700
  %vm1158 = vweird.f32 %v1151
  %vm1159 = vmor %vm1157, %vm1158
  %v1160 = vsel %vm1159, %v1151, %v1156
  %v1161 = vrsqrt.pop %v701
  %v1162 = vmul.f32 %v1161, %v701
  %v1163 = vmul.f32 %v1162, %v1161
  %v1164 = vmul.f32 0.5, %v1163
  %v1165 = vsub.f32 1.5, %v1164
  %v1166 = vmul.f32 %v1161, %v1165
  %vm1167 = vweird.f32 %v701
  %vm1168 = vweird.f32 %v1161
  %vm1169 = vmor %vm1167, %vm1168
  %v1170 = vsel %vm1169, %v1161, %v1166
  %v1171 = vrsqrt.pop %v702
  %v1172 = vmul.f32 %v1171, %v702
  %v1173 = vmul.f32 %v1172, %v1171
  %v1174 = vmul.f32 0.5, %v1173
  %v1175 = vsub.f32 1.5, %v1174
  %v1176 = vmul.f32 %v1171, %v1175
  %vm1177 = vweird.f32 %v702
  %vm1178 = vweird.f32 %v1171
  %vm1179 = vmor %vm1177, %vm1178
  %v1180 = vsel %vm1179, %v1171, %v1176
  %v1181 = vrsqrt.pop %v703
  %v1182 = vmul.f32 %v1181, %v703
  %v1183 = vmul.f32 %v1182, %v1181
  %v1184 = vmul.f32 0.5, %v1183
  %v1185 = vsub.f32 1.5, %v1184
  %v1186 = vmul.f32 %v1181, %v1185
  %vm1187 = vweird.f32 %v703
  %vm1188 = vweird.f32 %v1181
  %vm1189 = vmor %vm1187, %vm1188
  %v1190 = vsel %vm1189, %v1181, %v1186
  %v1191 = vrsqrt.pop %v704
  %v1192 = vmul.f32 %v1191, %v704
  %v1193 = vmul.f32 %v1192, %v1191
  %v1194 = vmul.f32 0.5, %v1193
  %v1195 = vsub.f32 1.5, %v1194
  %v1196 = vmul.f32 %v1191, %v1195
  %vm1197 = vweird.f32 %v704
  %vm1198 = vweird.f32 %v1191
  %vm1199 = vmor %vm1197, %vm1198
  %v1200 = vsel %vm1199, %v1191, %v1196
  %v1201 = vrsqrt.pop %v705
  %v1202 = vmul.f32 %v1201, %v705
  %v1203 = vmul.f32 %v1202, %v1201
  %v1204 = vmul.f32 0.5, %v1203
  %v1205 = vsub.f32 1.5, %v1204
  %v1206 = vmul.f32 %v1201, %v1205
  %vm1207 = vweird.f32 %v705
  %vm1208 = vweird.f32 %v1201
  %vm1209 = vmor %vm1207, %vm1208
  %v1210 = vsel %vm1209, %v1201, %v1206
  %v1211 = vrsqrt.pop %v706
  %v1212 = vmul.f32 %v1211, %v706
  %v1213 = vmul.f32 %v1212, %v1211
  %v1214 = vmul.f32 0.5, %v1213
  %v1215 = vsub.f32 1.5, %v1214
  %v1216 = vmul.f32 %v1211, %v1215
  %vm1217 = vweird.f32 %v706
  %vm1218 = vweird.f32 %v1211
  %vm1219 = vmor %vm1217, %vm1218
  %v1220 = vsel %vm1219, %v1211, %v1216
  %v1221 = vrsqrt.pop %v707
  %v1222 = vmul.f32 %v1221, %v707
  %v1223 = vmul.f32 %v1222, %v1221
  %v1224 = vmul.f32 0.5, %v1223
  %v1225 = vsub.f32 1.5, %v1224
  %v1226 = vmul.f32 %v1221, %v1225
  %vm1227 = vweird.f32 %v707
  %vm1228 = vweird.f32 %v1221
  %vm1229 = vmor %vm1227, %vm1228
  %v1230 = vsel %vm1229, %v1221, %v1226
  %v1231 = vrsqrt.pop %v708
  %v1232 = vmul.f32 %v1231, %v708
  %v1233 = vmul.f32 %v1232, %v1231
  %v1234 = vmul.f32 0.5, %v1233
  %v1235 = vsub.f32 1.5, %v1234
  %v1236 = vmul.f32 %v1231, %v1235
  %vm1237 = vweird.f32 %v708
  %vm1238 = vweird.f32 %v1231
  %vm1239 = vmor %vm1237, %vm1238
  %v1240 = vsel %vm1239, %v1231, %v1236
  %v1241 = vrsqrt.pop %v709
  %v1242 = vmul.f32 %v1241, %v709
  %v1243 = vmul.f32 %v1242, %v1241
  %v1244 = vmul.f32 0.5, %v1243
  %v1245 = vsub.f32 1.5, %v1244
  %v1246 = vmul.f32 %v1241, %v1245
  %vm1247 = vweird.f32 %v709
  %vm1248 = vweird.f32 %v1241
  %vm1249 = vmor %vm1247, %vm1248
  %v1250 = vsel %vm1249, %v1241, %v1246
  %v1251 = vrsqrt.pop %v710
  %v1252 = vmul.f32 %v1251, %v710
  %v1253 = vmul.f32 %v1252, %v1251
  %v1254 = vmul.f32 0.5, %v1253
  %v1255 = vsub.f32 1.5, %v1254
  %v1256 = vmul.f32 %v1251, %v1255
  %vm1257 = vweird.f32 %v710
  %vm1258 = vweird.f32 %v1251
  %vm1259 = vmor %vm1257, %vm1258
  %v1260 = vsel %vm1259, %v1251, %v1256
  %v1261 = vrsqrt.pop %v711
  %v1262 = vmul.f32 %v1261, %v711
  %v1263 = vmul.f32 %v1262, %v1261
  %v1264 = vmul.f32 0.5, %v1263
  %v1265 = vsub.f32 1.5, %v1264
  %v1266 = vmul.f32 %v1261, %v1265
  %vm1267 = vweird.f32 %v711
  %vm1268 = vweird.f32 %v1261
  %vm1269 = vmor %vm1267, %vm1268
  %v1270 = vsel %vm1269, %v1261, %v1266
  %v1271 = vrsqrt.pop %v712
  %v1272 = vmul.f32 %v1271, %v712
  %v1273 = vmul.f32 %v1272, %v1271
  %v1274 = vmul.f32 0.5, %v1273
  %v1275 = vsub.f32 1.5, %v1274
  %v1276 = vmul.f32 %v1271, %v1275
  %vm1277 = vweird.f32 %v712
  %vm1278 = vweird.f32 %v1271
  %vm1279 = vmor %vm1277, %vm1278
  %v1280 = vsel %vm1279, %v1271, %v1276
  %v1281 = vrsqrt.pop %v713
  %v1282 = vmul.f32 %v1281, %v713
  %v1283 = vmul.f32 %v1282, %v1281
  %v1284 = vmul.f32 0.5, %v1283
  %v1285 = vsub.f32 1.5, %v1284
  %v1286 = vmul.f32 %v1281, %v1285
  %vm1287 = vweird.f32 %v713
  %vm1288 = vweird.f32 %v1281
  %vm1289 = vmor %vm1287, %vm1288
  %v1290 = vsel %vm1289, %v1281, %v1286
  %v1291 = vrsqrt.pop %v714
  %v1292 = vmul.f32 %v1291, %v714
  %v1293 = vmul.f32 %v1292, %v1291
  %v1294 = vmul.f32 0.5, %v1293
  %v1295 = vsub.f32 1.5, %v1294
  %v1296 = vmul.f32 %v1291, %v1295
  %vm1297 = vweird.f32 %v714
  %vm1298 = vweird.f32 %v1291
  %vm1299 = vmor %vm1297, %vm1298
  %v1300 = vsel %vm1299, %v1291, %v1296
  %v1301 = vrsqrt.pop %v715
  %v1302 = vmul.f32 %v1301, %v715
  %v1303 = vmul.f32 %v1302, %v1301
  %v1304 = vmul.f32 0.5, %v1303
  %v1305 = vsub.f32 1.5, %v1304
  %v1306 = vmul.f32 %v1301, %v1305
  %vm1307 = vweird.f32 %v715
  %vm1308 = vweird.f32 %v1301
  %vm1309 = vmor %vm1307, %vm1308
  %v1310 = vsel %vm1309, %v1301, %v1306
  %v1311 = vrsqrt.pop %v716
  %v1312 = vmul.f32 %v1311, %v716
  %v1313 = vmul.f32 %v1312, %v1311
  %v1314 = vmul.f32 0.5, %v1313
  %v1315 = vsub.f32 1.5, %v1314
  %v1316 = vmul.f32 %v1311, %v1315
  %vm1317 = vweird.f32 %v716
  %vm1318 = vweird.f32 %v1311
  %vm1319 = vmor %vm1317, %vm1318
  %v1320 = vsel %vm1319, %v1311, %v1316
  %v1321 = vrsqrt.pop %v717
  %v1322 = vmul.f32 %v1321, %v717
  %v1323 = vmul.f32 %v1322, %v1321
  %v1324 = vmul.f32 0.5, %v1323
  %v1325 = vsub.f32 1.5, %v1324
  %v1326 = vmul.f32 %v1321, %v1325
  %vm1327 = vweird.f32 %v717
  %vm1328 = vweird.f32 %v1321
  %vm1329 = vmor %vm1327, %vm1328
  %v1330 = vsel %vm1329, %v1321, %v1326
  %v1331 = vrsqrt.pop %v718
  %v1332 = vmul.f32 %v1331, %v718
  %v1333 = vmul.f32 %v1332, %v1331
  %v1334 = vmul.f32 0.5, %v1333
  %v1335 = vsub.f32 1.5, %v1334
  %v1336 = vmul.f32 %v1331, %v1335
  %vm1337 = vweird.f32 %v718
  %vm1338 = vweird.f32 %v1331
  %vm1339 = vmor %vm1337, %vm1338
  %v1340 = vsel %vm1339, %v1331, %v1336
  %v1341 = vrsqrt.pop %v719
  %v1342 = vmul.f32 %v1341, %v719
  %v1343 = vmul.f32 %v1342, %v1341
  %v1344 = vmul.f32 0.5, %v1343
  %v1345 = vsub.f32 1.5, %v1344
  %v1346 = vmul.f32 %v1341, %v1345
  %vm1347 = vweird.f32 %v719
  %vm1348 = vweird.f32 %v1341
  %vm1349 = vmor %vm1347, %vm1348
  %v1350 = vsel %vm1349, %v1341, %v1346
  %v1351 = vrsqrt.pop %v720
  %v1352 = vmul.f32 %v1351, %v720
  %v1353 = vmul.f32 %v1352, %v1351
  %v1354 = vmul.f32 0.5, %v1353
  %v1355 = vsub.f32 1.5, %v1354
  %v1356 = vmul.f32 %v1351, %v1355
  %vm1357 = vweird.f32 %v720
  %vm1358 = vweird.f32 %v1351
  %vm1359 = vmor %vm1357, %vm1358
  %v1360 = vsel %vm1359, %v1351, %v1356
  %v1361 = vmul.f32 %v337, %v730
  %v1362 = vmul.f32 %v338, %v740
  %v1363 = vmul.f32 %v339, %v750
  %v1364 = vmul.f32 %v340, %v760
  %v1365 = vmul.f32 %v341, %v770
  %v1366 = vmul.f32 %v342, %v780
  %v1367 = vmul.f32 %v343, %v790
  %v1368 = vmul.f32 %v344, %v800
  %v1369 = vmul.f32 %v345, %v810
  %v1370 = vmul.f32 %v346, %v820
  %v1371 = vmul.f32 %v347, %v830
  %v1372 = vmul.f32 %v348, %v840
  %v1373 = vmul.f32 %v349, %v850
  %v1374 = vmul.f32 %v350, %v860
  %v1375 = vmul.f32 %v351, %v870
  %v1376 = vmul.f32 %v352, %v880
  %v1377 = vmul.f32 %v353, %v890
  %v1378 = vmul.f32 %v354, %v900
  %v1379 = vmul.f32 %v355, %v910
  %v1380 = vmul.f32 %v356, %v920
  %v1381 = vmul.f32 %v357, %v930
  %v1382 = vmul.f32 %v358, %v940
  %v1383 = vmul.f32 %v359, %v950
  %v1384 = vmul.f32 %v360, %v960
  %v1385 = vmul.f32 %v361, %v970
  %v1386 = vmul.f32 %v362, %v980
  %v1387 = vmul.f32 %v363, %v990
  %v1388 = vmul.f32 %v364, %v1000
  %v1389 = vmul.f32 %v365, %v1010
  %v1390 = vmul.f32 %v366, %v1020
  %v1391 = vmul.f32 %v367, %v1030
  %v1392 = vmul.f32 %v368, %v1040
  %v1393 = vmul.f32 %v369, %v1050
  %v1394 = vmul.f32 %v370, %v1060
  %v1395 = vmul.f32 %v371, %v1070
  %v1396 = vmul.f32 %v372, %v1080
  %v1397 = vmul.f32 %v373, %v1090
  %v1398 = vmul.f32 %v374, %v1100
  %v1399 = vmul.f32 %v375, %v1110
  %v1400 = vmul.f32 %v376, %v1120
  %v1401 = vmul.f32 %v377, %v1130
  %v1402 = vmul.f32 %v378, %v1140
  %v1403 = vmul.f32 %v379, %v1150
  %v1404 = vmul.f32 %v380, %v1160
  %v1405 = vmul.f32 %v381, %v1170
  %v1406 = vmul.f32 %v382, %v1180
  %v1407 = vmul.f32 %v383, %v1190
  %v1408 = vmul.f32 %v384, %v1200
  %v1409 = vmul.f32 %v385, %v1210
  %v1410 = vmul.f32 %v386, %v1220
  %v1411 = vmul.f32 %v387, %v1230
  %v1412 = vmul.f32 %v388, %v1240
  %v1413 = vmul.f32 %v389, %v1250
  %v1414 = vmul.f32 %v390, %v1260
  %v1415 = vmul.f32 %v391, %v1270
  %v1416 = vmul.f32 %v392, %v1280
  %v1417 = vmul.f32 %v393, %v1290
  %v1418 = vmul.f32 %v394, %v1300
  %v1419 = vmul.f32 %v395, %v1310
  %v1420 = vmul.f32 %v396, %v1320
  %v1421 = vmul.f32 %v397, %v1330
  %v1422 = vmul.f32 %v398, %v1340
  %v1423 = vmul.f32 %v399, %v1350
  %v1424 = vmul.f32 %v400, %v1360
  %v1425 = vld [vmem:[%s1] sm:$0x1]
  %v1427 = vperm.slane %v1425, 0
  %v1429 = vmul.f32 %v1361, %v1427
  %v1430 = vmul.f32 %v1362, %v1427
  %v1431 = vmul.f32 %v1363, %v1427
  %v1432 = vmul.f32 %v1364, %v1427
  %v1433 = vmul.f32 %v1365, %v1427
  %v1434 = vmul.f32 %v1366, %v1427
  %v1435 = vmul.f32 %v1367, %v1427
  %v1436 = vmul.f32 %v1368, %v1427
  %v1437 = vmul.f32 %v1369, %v1427
  %v1438 = vmul.f32 %v1370, %v1427
  %v1439 = vmul.f32 %v1371, %v1427
  %v1440 = vmul.f32 %v1372, %v1427
  %v1441 = vmul.f32 %v1373, %v1427
  %v1442 = vmul.f32 %v1374, %v1427
  %v1443 = vmul.f32 %v1375, %v1427
  %v1444 = vmul.f32 %v1376, %v1427
  %v1445 = vmul.f32 %v1377, %v1427
  %v1446 = vmul.f32 %v1378, %v1427
  %v1447 = vmul.f32 %v1379, %v1427
  %v1448 = vmul.f32 %v1380, %v1427
  %v1449 = vmul.f32 %v1381, %v1427
  %v1450 = vmul.f32 %v1382, %v1427
  %v1451 = vmul.f32 %v1383, %v1427
  %v1452 = vmul.f32 %v1384, %v1427
  %v1453 = vmul.f32 %v1385, %v1427
  %v1454 = vmul.f32 %v1386, %v1427
  %v1455 = vmul.f32 %v1387, %v1427
  %v1456 = vmul.f32 %v1388, %v1427
  %v1457 = vmul.f32 %v1389, %v1427
  %v1458 = vmul.f32 %v1390, %v1427
  %v1459 = vmul.f32 %v1391, %v1427
  %v1460 = vmul.f32 %v1392, %v1427
  %v1461 = vmul.f32 %v1393, %v1427
  %v1462 = vmul.f32 %v1394, %v1427
  %v1463 = vmul.f32 %v1395, %v1427
  %v1464 = vmul.f32 %v1396, %v1427
  %v1465 = vmul.f32 %v1397, %v1427
  %v1466 = vmul.f32 %v1398, %v1427
  %v1467 = vmul.f32 %v1399, %v1427
  %v1468 = vmul.f32 %v1400, %v1427
  %v1469 = vmul.f32 %v1401, %v1427
  %v1470 = vmul.f32 %v1402, %v1427
  %v1471 = vmul.f32 %v1403, %v1427
  %v1472 = vmul.f32 %v1404, %v1427
  %v1473 = vmul.f32 %v1405, %v1427
  %v1474 = vmul.f32 %v1406, %v1427
  %v1475 = vmul.f32 %v1407, %v1427
  %v1476 = vmul.f32 %v1408, %v1427
  %v1477 = vmul.f32 %v1409, %v1427
  %v1478 = vmul.f32 %v1410, %v1427
  %v1479 = vmul.f32 %v1411, %v1427
  %v1480 = vmul.f32 %v1412, %v1427
  %v1481 = vmul.f32 %v1413, %v1427
  %v1482 = vmul.f32 %v1414, %v1427
  %v1483 = vmul.f32 %v1415, %v1427
  %v1484 = vmul.f32 %v1416, %v1427
  %v1485 = vmul.f32 %v1417, %v1427
  %v1486 = vmul.f32 %v1418, %v1427
  %v1487 = vmul.f32 %v1419, %v1427
  %v1488 = vmul.f32 %v1420, %v1427
  %v1489 = vmul.f32 %v1421, %v1427
  %v1490 = vmul.f32 %v1422, %v1427
  %v1491 = vmul.f32 %v1423, %v1427
  %v1492 = vmul.f32 %v1424, %v1427
  %v1493 = vld [vmem:[%s2] sm:$0x1]
  %v1495 = vperm.slane %v1493, 0
  %v1497 = vadd.f32 %v1429, %v1495
  %v1498 = vadd.f32 %v1430, %v1495
  %v1499 = vadd.f32 %v1431, %v1495
  %v1500 = vadd.f32 %v1432, %v1495
  %v1501 = vadd.f32 %v1433, %v1495
  %v1502 = vadd.f32 %v1434, %v1495
  %v1503 = vadd.f32 %v1435, %v1495
  %v1504 = vadd.f32 %v1436, %v1495
  %v1505 = vadd.f32 %v1437, %v1495
  %v1506 = vadd.f32 %v1438, %v1495
  %v1507 = vadd.f32 %v1439, %v1495
  %v1508 = vadd.f32 %v1440, %v1495
  %v1509 = vadd.f32 %v1441, %v1495
  %v1510 = vadd.f32 %v1442, %v1495
  %v1511 = vadd.f32 %v1443, %v1495
  %v1512 = vadd.f32 %v1444, %v1495
  %v1513 = vadd.f32 %v1445, %v1495
  %v1514 = vadd.f32 %v1446, %v1495
  %v1515 = vadd.f32 %v1447, %v1495
  %v1516 = vadd.f32 %v1448, %v1495
  %v1517 = vadd.f32 %v1449, %v1495
  %v1518 = vadd.f32 %v1450, %v1495
  %v1519 = vadd.f32 %v1451, %v1495
  %v1520 = vadd.f32 %v1452, %v1495
  %v1521 = vadd.f32 %v1453, %v1495
  %v1522 = vadd.f32 %v1454, %v1495
  %v1523 = vadd.f32 %v1455, %v1495
  %v1524 = vadd.f32 %v1456, %v1495
  %v1525 = vadd.f32 %v1457, %v1495
  %v1526 = vadd.f32 %v1458, %v1495
  %v1527 = vadd.f32 %v1459, %v1495
  %v1528 = vadd.f32 %v1460, %v1495
  %v1529 = vadd.f32 %v1461, %v1495
  %v1530 = vadd.f32 %v1462, %v1495
  %v1531 = vadd.f32 %v1463, %v1495
  %v1532 = vadd.f32 %v1464, %v1495
  %v1533 = vadd.f32 %v1465, %v1495
  %v1534 = vadd.f32 %v1466, %v1495
  %v1535 = vadd.f32 %v1467, %v1495
  %v1536 = vadd.f32 %v1468, %v1495
  %v1537 = vadd.f32 %v1469, %v1495
  %v1538 = vadd.f32 %v1470, %v1495
  %v1539 = vadd.f32 %v1471, %v1495
  %v1540 = vadd.f32 %v1472, %v1495
  %v1541 = vadd.f32 %v1473, %v1495
  %v1542 = vadd.f32 %v1474, %v1495
  %v1543 = vadd.f32 %v1475, %v1495
  %v1544 = vadd.f32 %v1476, %v1495
  %v1545 = vadd.f32 %v1477, %v1495
  %v1546 = vadd.f32 %v1478, %v1495
  %v1547 = vadd.f32 %v1479, %v1495
  %v1548 = vadd.f32 %v1480, %v1495
  %v1549 = vadd.f32 %v1481, %v1495
  %v1550 = vadd.f32 %v1482, %v1495
  %v1551 = vadd.f32 %v1483, %v1495
  %v1552 = vadd.f32 %v1484, %v1495
  %v1553 = vadd.f32 %v1485, %v1495
  %v1554 = vadd.f32 %v1486, %v1495
  %v1555 = vadd.f32 %v1487, %v1495
  %v1556 = vadd.f32 %v1488, %v1495
  %v1557 = vadd.f32 %v1489, %v1495
  %v1558 = vadd.f32 %v1490, %v1495
  %v1559 = vadd.f32 %v1491, %v1495
  %v1560 = vadd.f32 %v1492, %v1495
  %v1561 = vpack.c.bf16 %v1498, %v1497
  %v1562 = vpack.c.bf16 %v1500, %v1499
  %v1563 = vpack.c.bf16 %v1502, %v1501
  %v1564 = vpack.c.bf16 %v1504, %v1503
  %v1565 = vpack.c.bf16 %v1506, %v1505
  %v1566 = vpack.c.bf16 %v1508, %v1507
  %v1567 = vpack.c.bf16 %v1510, %v1509
  %v1568 = vpack.c.bf16 %v1512, %v1511
  %v1569 = vpack.c.bf16 %v1514, %v1513
  %v1570 = vpack.c.bf16 %v1516, %v1515
  %v1571 = vpack.c.bf16 %v1518, %v1517
  %v1572 = vpack.c.bf16 %v1520, %v1519
  %v1573 = vpack.c.bf16 %v1522, %v1521
  %v1574 = vpack.c.bf16 %v1524, %v1523
  %v1575 = vpack.c.bf16 %v1526, %v1525
  %v1576 = vpack.c.bf16 %v1528, %v1527
  %v1577 = vpack.c.bf16 %v1530, %v1529
  %v1578 = vpack.c.bf16 %v1532, %v1531
  %v1579 = vpack.c.bf16 %v1534, %v1533
  %v1580 = vpack.c.bf16 %v1536, %v1535
  %v1581 = vpack.c.bf16 %v1538, %v1537
  %v1582 = vpack.c.bf16 %v1540, %v1539
  %v1583 = vpack.c.bf16 %v1542, %v1541
  %v1584 = vpack.c.bf16 %v1544, %v1543
  %v1585 = vpack.c.bf16 %v1546, %v1545
  %v1586 = vpack.c.bf16 %v1548, %v1547
  %v1587 = vpack.c.bf16 %v1550, %v1549
  %v1588 = vpack.c.bf16 %v1552, %v1551
  %v1589 = vpack.c.bf16 %v1554, %v1553
  %v1590 = vpack.c.bf16 %v1556, %v1555
  %v1591 = vpack.c.bf16 %v1558, %v1557
  %v1592 = vpack.c.bf16 %v1560, %v1559
  %v1593 = vld [vmem:[%s3] sm:$0xf]
  %v1594 = vld [vmem:[%s3 + $0x4] sm:$0xf]
  %v1595 = vld [vmem:[%s3 + $0x8] sm:$0xf]
  %v1596 = vld [vmem:[%s3 + $0xc] sm:$0xf]
  %v1597 = vld [vmem:[%s3 + $0x10] sm:$0xf]
  %v1598 = vld [vmem:[%s3 + $0x14] sm:$0xf]
  %v1599 = vld [vmem:[%s3 + $0x18] sm:$0xf]
  %v1600 = vld [vmem:[%s3 + $0x1c] sm:$0xf]
  %v1601 = vld [vmem:[%s3 + $0x20] sm:$0xf]
  %v1602 = vld [vmem:[%s3 + $0x24] sm:$0xf]
  %v1603 = vld [vmem:[%s3 + $0x28] sm:$0xf]
  %v1604 = vld [vmem:[%s3 + $0x2c] sm:$0xf]
  %v1605 = vld [vmem:[%s3 + $0x30] sm:$0xf]
  %v1606 = vld [vmem:[%s3 + $0x34] sm:$0xf]
  %v1607 = vld [vmem:[%s3 + $0x38] sm:$0xf]
  %v1608 = vld [vmem:[%s3 + $0x3c] sm:$0xf]
  %v1625 = vunpack.c.l.b16 %v1593
  %v1626 = vunpack.c.l.b16 %v1594
  %v1627 = vunpack.c.l.b16 %v1595
  %v1628 = vunpack.c.l.b16 %v1596
  %v1629 = vunpack.c.l.b16 %v1597
  %v1630 = vunpack.c.l.b16 %v1598
  %v1631 = vunpack.c.l.b16 %v1599
  %v1632 = vunpack.c.l.b16 %v1600
  %v1633 = vunpack.c.l.b16 %v1601
  %v1634 = vunpack.c.l.b16 %v1602
  %v1635 = vunpack.c.l.b16 %v1603
  %v1636 = vunpack.c.l.b16 %v1604
  %v1637 = vunpack.c.l.b16 %v1605
  %v1638 = vunpack.c.l.b16 %v1606
  %v1639 = vunpack.c.l.b16 %v1607
  %v1640 = vunpack.c.l.b16 %v1608
  %v1641 = vpack.c.b16 %v1626, %v1625
  %v1642 = vpack.c.b16 %v1628, %v1627
  %v1643 = vpack.c.b16 %v1630, %v1629
  %v1644 = vpack.c.b16 %v1632, %v1631
  %v1645 = vpack.c.b16 %v1634, %v1633
  %v1646 = vpack.c.b16 %v1636, %v1635
  %v1647 = vpack.c.b16 %v1638, %v1637
  %v1648 = vpack.c.b16 %v1640, %v1639
  %1657 = vmatpush.bf16.msra.mxu0 %v1648
  %1658 = vmatpush.bf16.msra.mxu0 %v1647
  %1659 = vmatpush.bf16.msra.mxu0 %v1646
  %1660 = vmatpush.bf16.msra.mxu0 %v1645
  %1661 = vmatpush.bf16.msra.mxu0 %v1644
  %1662 = vmatpush.bf16.msra.mxu0 %v1643
  %1663 = vmatpush.bf16.msra.mxu0 %v1642
  %1664 = vmatpush.bf16.msra.mxu0 %v1641
  %1665 = vmatmul.bf16.gmra.mxu0 %v1561
  %v1666 = vpop.f32.mrf.mxu0
  %v1667 = vadd.f32 0.0, %v1666
  %v1668 = vpop.f32.mrf.mxu0
  %v1669 = vadd.f32 0.0, %v1668
  %1670 = vmatmul.bf16.gmra.mxu0 %v1562
  %v1671 = vpop.f32.mrf.mxu0
  %v1672 = vadd.f32 0.0, %v1671
  %v1673 = vpop.f32.mrf.mxu0
  %v1674 = vadd.f32 0.0, %v1673
  %1675 = vmatmul.bf16.gmra.mxu0 %v1563
  %v1676 = vpop.f32.mrf.mxu0
  %v1677 = vadd.f32 0.0, %v1676
  %v1678 = vpop.f32.mrf.mxu0
  %v1679 = vadd.f32 0.0, %v1678
  %1680 = vmatmul.bf16.gmra.mxu0 %v1564
  %v1681 = vpop.f32.mrf.mxu0
  %v1682 = vadd.f32 0.0, %v1681
  %v1683 = vpop.f32.mrf.mxu0
  %v1684 = vadd.f32 0.0, %v1683
  %1685 = vmatmul.bf16.gmra.mxu0 %v1565
  %v1686 = vpop.f32.mrf.mxu0
  %v1687 = vadd.f32 0.0, %v1686
  %v1688 = vpop.f32.mrf.mxu0
  %v1689 = vadd.f32 0.0, %v1688
  %1690 = vmatmul.bf16.gmra.mxu0 %v1566
  %v1691 = vpop.f32.mrf.mxu0
  %v1692 = vadd.f32 0.0, %v1691
  %v1693 = vpop.f32.mrf.mxu0
  %v1694 = vadd.f32 0.0, %v1693
  %1695 = vmatmul.bf16.gmra.mxu0 %v1567
  %v1696 = vpop.f32.mrf.mxu0
  %v1697 = vadd.f32 0.0, %v1696
  %v1698 = vpop.f32.mrf.mxu0
  %v1699 = vadd.f32 0.0, %v1698
  %1700 = vmatmul.bf16.gmra.mxu0 %v1568
  %v1701 = vpop.f32.mrf.mxu0
  %v1702 = vadd.f32 0.0, %v1701
  %v1703 = vpop.f32.mrf.mxu0
  %v1704 = vadd.f32 0.0, %v1703
  %1705 = vmatmul.bf16.gmra.mxu0 %v1569
  %v1706 = vpop.f32.mrf.mxu0
  %v1707 = vadd.f32 0.0, %v1706
  %v1708 = vpop.f32.mrf.mxu0
  %v1709 = vadd.f32 0.0, %v1708
  %1710 = vmatmul.bf16.gmra.mxu0 %v1570
  %v1711 = vpop.f32.mrf.mxu0
  %v1712 = vadd.f32 0.0, %v1711
  %v1713 = vpop.f32.mrf.mxu0
  %v1714 = vadd.f32 0.0, %v1713
  %1715 = vmatmul.bf16.gmra.mxu0 %v1571
  %v1716 = vpop.f32.mrf.mxu0
  %v1717 = vadd.f32 0.0, %v1716
  %v1718 = vpop.f32.mrf.mxu0
  %v1719 = vadd.f32 0.0, %v1718
  %1720 = vmatmul.bf16.gmra.mxu0 %v1572
  %v1721 = vpop.f32.mrf.mxu0
  %v1722 = vadd.f32 0.0, %v1721
  %v1723 = vpop.f32.mrf.mxu0
  %v1724 = vadd.f32 0.0, %v1723
  %1725 = vmatmul.bf16.gmra.mxu0 %v1573
  %v1726 = vpop.f32.mrf.mxu0
  %v1727 = vadd.f32 0.0, %v1726
  %v1728 = vpop.f32.mrf.mxu0
  %v1729 = vadd.f32 0.0, %v1728
  %1730 = vmatmul.bf16.gmra.mxu0 %v1574
  %v1731 = vpop.f32.mrf.mxu0
  %v1732 = vadd.f32 0.0, %v1731
  %v1733 = vpop.f32.mrf.mxu0
  %v1734 = vadd.f32 0.0, %v1733
  %1735 = vmatmul.bf16.gmra.mxu0 %v1575
  %v1736 = vpop.f32.mrf.mxu0
  %v1737 = vadd.f32 0.0, %v1736
  %v1738 = vpop.f32.mrf.mxu0
  %v1739 = vadd.f32 0.0, %v1738
  %1740 = vmatmul.bf16.gmra.mxu0 %v1576
  %v1741 = vpop.f32.mrf.mxu0
  %v1742 = vadd.f32 0.0, %v1741
  %v1743 = vpop.f32.mrf.mxu0
  %v1744 = vadd.f32 0.0, %v1743
  %1745 = vmatmul.bf16.gmra.mxu0 %v1577
  %v1746 = vpop.f32.mrf.mxu0
  %v1747 = vadd.f32 0.0, %v1746
  %v1748 = vpop.f32.mrf.mxu0
  %v1749 = vadd.f32 0.0, %v1748
  %1750 = vmatmul.bf16.gmra.mxu0 %v1578
  %v1751 = vpop.f32.mrf.mxu0
  %v1752 = vadd.f32 0.0, %v1751
  %v1753 = vpop.f32.mrf.mxu0
  %v1754 = vadd.f32 0.0, %v1753
  %1755 = vmatmul.bf16.gmra.mxu0 %v1579
  %v1756 = vpop.f32.mrf.mxu0
  %v1757 = vadd.f32 0.0, %v1756
  %v1758 = vpop.f32.mrf.mxu0
  %v1759 = vadd.f32 0.0, %v1758
  %1760 = vmatmul.bf16.gmra.mxu0 %v1580
  %v1761 = vpop.f32.mrf.mxu0
  %v1762 = vadd.f32 0.0, %v1761
  %v1763 = vpop.f32.mrf.mxu0
  %v1764 = vadd.f32 0.0, %v1763
  %1765 = vmatmul.bf16.gmra.mxu0 %v1581
  %v1766 = vpop.f32.mrf.mxu0
  %v1767 = vadd.f32 0.0, %v1766
  %v1768 = vpop.f32.mrf.mxu0
  %v1769 = vadd.f32 0.0, %v1768
  %1770 = vmatmul.bf16.gmra.mxu0 %v1582
  %v1771 = vpop.f32.mrf.mxu0
  %v1772 = vadd.f32 0.0, %v1771
  %v1773 = vpop.f32.mrf.mxu0
  %v1774 = vadd.f32 0.0, %v1773
  %1775 = vmatmul.bf16.gmra.mxu0 %v1583
  %v1776 = vpop.f32.mrf.mxu0
  %v1777 = vadd.f32 0.0, %v1776
  %v1778 = vpop.f32.mrf.mxu0
  %v1779 = vadd.f32 0.0, %v1778
  %1780 = vmatmul.bf16.gmra.mxu0 %v1584
  %v1781 = vpop.f32.mrf.mxu0
  %v1782 = vadd.f32 0.0, %v1781
  %v1783 = vpop.f32.mrf.mxu0
  %v1784 = vadd.f32 0.0, %v1783
  %1785 = vmatmul.bf16.gmra.mxu0 %v1585
  %v1786 = vpop.f32.mrf.mxu0
  %v1787 = vadd.f32 0.0, %v1786
  %v1788 = vpop.f32.mrf.mxu0
  %v1789 = vadd.f32 0.0, %v1788
  %1790 = vmatmul.bf16.gmra.mxu0 %v1586
  %v1791 = vpop.f32.mrf.mxu0
  %v1792 = vadd.f32 0.0, %v1791
  %v1793 = vpop.f32.mrf.mxu0
  %v1794 = vadd.f32 0.0, %v1793
  %1795 = vmatmul.bf16.gmra.mxu0 %v1587
  %v1796 = vpop.f32.mrf.mxu0
  %v1797 = vadd.f32 0.0, %v1796
  %v1798 = vpop.f32.mrf.mxu0
  %v1799 = vadd.f32 0.0, %v1798
  %1800 = vmatmul.bf16.gmra.mxu0 %v1588
  %v1801 = vpop.f32.mrf.mxu0
  %v1802 = vadd.f32 0.0, %v1801
  %v1803 = vpop.f32.mrf.mxu0
  %v1804 = vadd.f32 0.0, %v1803
  %1805 = vmatmul.bf16.gmra.mxu0 %v1589
  %v1806 = vpop.f32.mrf.mxu0
  %v1807 = vadd.f32 0.0, %v1806
  %v1808 = vpop.f32.mrf.mxu0
  %v1809 = vadd.f32 0.0, %v1808
  %1810 = vmatmul.bf16.gmra.mxu0 %v1590
  %v1811 = vpop.f32.mrf.mxu0
  %v1812 = vadd.f32 0.0, %v1811
  %v1813 = vpop.f32.mrf.mxu0
  %v1814 = vadd.f32 0.0, %v1813
  %1815 = vmatmul.bf16.gmra.mxu0 %v1591
  %v1816 = vpop.f32.mrf.mxu0
  %v1817 = vadd.f32 0.0, %v1816
  %v1818 = vpop.f32.mrf.mxu0
  %v1819 = vadd.f32 0.0, %v1818
  %1820 = vmatmul.bf16.gmra.mxu0 %v1592
  %v1821 = vpop.f32.mrf.mxu0
  %v1822 = vadd.f32 0.0, %v1821
  %v1823 = vpop.f32.mrf.mxu0
  %v1824 = vadd.f32 0.0, %v1823
  %1825 = vdwg.mxu0
  %vm1826 = vcmask 523264
  %1827 = vst.msk [vmem:[%s4] sm:$0xff] %vm1826, %v1667
  %1828 = vst.msk [vmem:[%s4 + $0x8] sm:$0xff] %vm1826, %v1669
  %1829 = vst.msk [vmem:[%s4 + $0x10] sm:$0xff] %vm1826, %v1672
  %1830 = vst.msk [vmem:[%s4 + $0x18] sm:$0xff] %vm1826, %v1674
  %1831 = vst.msk [vmem:[%s4 + $0x20] sm:$0xff] %vm1826, %v1677
  %1832 = vst.msk [vmem:[%s4 + $0x28] sm:$0xff] %vm1826, %v1679
  %1833 = vst.msk [vmem:[%s4 + $0x30] sm:$0xff] %vm1826, %v1682
  %1834 = vst.msk [vmem:[%s4 + $0x38] sm:$0xff] %vm1826, %v1684
  %1835 = vst.msk [vmem:[%s4 + $0x40] sm:$0xff] %vm1826, %v1687
  %1836 = vst.msk [vmem:[%s4 + $0x48] sm:$0xff] %vm1826, %v1689
  %1837 = vst.msk [vmem:[%s4 + $0x50] sm:$0xff] %vm1826, %v1692
  %1838 = vst.msk [vmem:[%s4 + $0x58] sm:$0xff] %vm1826, %v1694
  %1839 = vst.msk [vmem:[%s4 + $0x60] sm:$0xff] %vm1826, %v1697
  %1840 = vst.msk [vmem:[%s4 + $0x68] sm:$0xff] %vm1826, %v1699
  %1841 = vst.msk [vmem:[%s4 + $0x70] sm:$0xff] %vm1826, %v1702
  %1842 = vst.msk [vmem:[%s4 + $0x78] sm:$0xff] %vm1826, %v1704
  %1843 = vst.msk [vmem:[%s4 + $0x80] sm:$0xff] %vm1826, %v1707
  %1844 = vst.msk [vmem:[%s4 + $0x88] sm:$0xff] %vm1826, %v1709
  %1845 = vst.msk [vmem:[%s4 + $0x90] sm:$0xff] %vm1826, %v1712
  %1846 = vst.msk [vmem:[%s4 + $0x98] sm:$0xff] %vm1826, %v1714
  %1847 = vst.msk [vmem:[%s4 + $0xa0] sm:$0xff] %vm1826, %v1717
  %1848 = vst.msk [vmem:[%s4 + $0xa8] sm:$0xff] %vm1826, %v1719
  %1849 = vst.msk [vmem:[%s4 + $0xb0] sm:$0xff] %vm1826, %v1722
  %1850 = vst.msk [vmem:[%s4 + $0xb8] sm:$0xff] %vm1826, %v1724
  %1851 = vst.msk [vmem:[%s4 + $0xc0] sm:$0xff] %vm1826, %v1727
  %1852 = vst.msk [vmem:[%s4 + $0xc8] sm:$0xff] %vm1826, %v1729
  %1853 = vst.msk [vmem:[%s4 + $0xd0] sm:$0xff] %vm1826, %v1732
  %1854 = vst.msk [vmem:[%s4 + $0xd8] sm:$0xff] %vm1826, %v1734
  %1855 = vst.msk [vmem:[%s4 + $0xe0] sm:$0xff] %vm1826, %v1737
  %1856 = vst.msk [vmem:[%s4 + $0xe8] sm:$0xff] %vm1826, %v1739
  %1857 = vst.msk [vmem:[%s4 + $0xf0] sm:$0xff] %vm1826, %v1742
  %1858 = vst.msk [vmem:[%s4 + $0xf8] sm:$0xff] %vm1826, %v1744
  %1859 = vst.msk [vmem:[%s4 + $0x100] sm:$0xff] %vm1826, %v1747
  %1860 = vst.msk [vmem:[%s4 + $0x108] sm:$0xff] %vm1826, %v1749
  %1861 = vst.msk [vmem:[%s4 + $0x110] sm:$0xff] %vm1826, %v1752
  %1862 = vst.msk [vmem:[%s4 + $0x118] sm:$0xff] %vm1826, %v1754
  %1863 = vst.msk [vmem:[%s4 + $0x120] sm:$0xff] %vm1826, %v1757
  %1864 = vst.msk [vmem:[%s4 + $0x128] sm:$0xff] %vm1826, %v1759
  %1865 = vst.msk [vmem:[%s4 + $0x130] sm:$0xff] %vm1826, %v1762
  %1866 = vst.msk [vmem:[%s4 + $0x138] sm:$0xff] %vm1826, %v1764
  %1867 = vst.msk [vmem:[%s4 + $0x140] sm:$0xff] %vm1826, %v1767
  %1868 = vst.msk [vmem:[%s4 + $0x148] sm:$0xff] %vm1826, %v1769
  %1869 = vst.msk [vmem:[%s4 + $0x150] sm:$0xff] %vm1826, %v1772
  %1870 = vst.msk [vmem:[%s4 + $0x158] sm:$0xff] %vm1826, %v1774
  %1871 = vst.msk [vmem:[%s4 + $0x160] sm:$0xff] %vm1826, %v1777
  %1872 = vst.msk [vmem:[%s4 + $0x168] sm:$0xff] %vm1826, %v1779
  %1873 = vst.msk [vmem:[%s4 + $0x170] sm:$0xff] %vm1826, %v1782
  %1874 = vst.msk [vmem:[%s4 + $0x178] sm:$0xff] %vm1826, %v1784
  %1875 = vst.msk [vmem:[%s4 + $0x180] sm:$0xff] %vm1826, %v1787
  %1876 = vst.msk [vmem:[%s4 + $0x188] sm:$0xff] %vm1826, %v1789
  %1877 = vst.msk [vmem:[%s4 + $0x190] sm:$0xff] %vm1826, %v1792
  %1878 = vst.msk [vmem:[%s4 + $0x198] sm:$0xff] %vm1826, %v1794
  %1879 = vst.msk [vmem:[%s4 + $0x1a0] sm:$0xff] %vm1826, %v1797
  %1880 = vst.msk [vmem:[%s4 + $0x1a8] sm:$0xff] %vm1826, %v1799
  %1881 = vst.msk [vmem:[%s4 + $0x1b0] sm:$0xff] %vm1826, %v1802
  %1882 = vst.msk [vmem:[%s4 + $0x1b8] sm:$0xff] %vm1826, %v1804
  %1883 = vst.msk [vmem:[%s4 + $0x1c0] sm:$0xff] %vm1826, %v1807
  %1884 = vst.msk [vmem:[%s4 + $0x1c8] sm:$0xff] %vm1826, %v1809
  %1885 = vst.msk [vmem:[%s4 + $0x1d0] sm:$0xff] %vm1826, %v1812
  %1886 = vst.msk [vmem:[%s4 + $0x1d8] sm:$0xff] %vm1826, %v1814
  %1887 = vst.msk [vmem:[%s4 + $0x1e0] sm:$0xff] %vm1826, %v1817
  %1888 = vst.msk [vmem:[%s4 + $0x1e8] sm:$0xff] %vm1826, %v1819
  %1889 = vst.msk [vmem:[%s4 + $0x1f0] sm:$0xff] %vm1826, %v1822
  %1890 = vst.msk [vmem:[%s4 + $0x1f8] sm:$0xff] %vm1826, %v1824
  // Predicated region
  $region18: #{downsample_forward.1} parent=0 // pred_check
    _
  $region19: #{downsample_forward.1} parent=0 // pred_check_branch
    %1892 = sbr.rel (0) target = $region21
  $region20: #{downsample_forward.1} parent=0 // pred_region
    _
  $region21: #{downsample_forward.1} parent=0 // pred_fallthru
    _
  // Predicated region
  $region22: #{downsample_forward.1} parent=0 // pred_check
    _
  $region23: #{downsample_forward.1} parent=0 // pred_check_branch
    %1894 = sbr.rel (0) target = $region25
  $region24: #{downsample_forward.1} parent=0 // pred_region
    _
  $region25: #{downsample_forward.1} parent=0 // pred_fallthru
    _

</llo_original>
